<compile_context>
chip_gen: v7x
topology: tpu7x:2x2x1
jax: 0.10.0
libtpu: 0.0.40
codegen_flags: <defaults>
</compile_context>

<pallas_src>
import jax
import jax.numpy as jnp
from jax import lax
from jax.experimental import pallas as pl
from jax.experimental.pallas import tpu as pltpu


def _default_tanh_dtype():
    """bf16 bias-add/tanh only on generations with a bf16 VPU/EUP path (v6e, v7x)."""
    try:
        kind = jax.devices()[0].device_kind.lower()
    except Exception:
        return jnp.float32
    if "v6" in kind or "v7" in kind:
        return jnp.bfloat16
    return jnp.float32


def make_v_kernel(tanh_dtype):
    def v_kernel(x_ref, w1_ref, b1_ref, w2_ref, b2_ref, w3_ref, b3_ref, o_ref):
        # fc1 on the MXU with f32 accumulation.  HIGHEST precision only on the
        # pure-f32 path (bf16 operands are single-pass anyway); MXU has ample slack.
        x = x_ref[...]
        p1 = lax.Precision.HIGHEST if x.dtype == jnp.float32 else None
        h1 = jnp.dot(x, w1_ref[...], preferred_element_type=jnp.float32, precision=p1)
        # bias-add + tanh in tanh_dtype: bf16 on v6e/v7x halves pressure on the
        # single EUP slot (the critical unit); f32 on v5e (no bf16 EUP path).
        h1 = jnp.tanh(h1.astype(tanh_dtype) + b1_ref[...])          # (TB, H)

        h1 = h1.astype(w2_ref.dtype)
        p2 = lax.Precision.HIGHEST if h1.dtype == jnp.float32 else None
        h2 = jnp.dot(h1, w2_ref[...], preferred_element_type=jnp.float32, precision=p2)
        h2 = jnp.tanh(h2.astype(tanh_dtype) + b2_ref[...])          # (TB, H2)

        # fc3: contract w3 (1, H2) against h2's feature axis (rhs-transposed matmul)
        # -> lane-dense (1, TB) row output.  h2 stays in tanh_dtype (bf16 on
        # v6e/v7x), which also halves any XLU transpose Mosaic emits to feed the
        # MXU for this contraction.
        h2 = h2.astype(w3_ref.dtype)
        p3 = lax.Precision.HIGHEST if h2.dtype == jnp.float32 else None
        row = lax.dot_general(w3_ref[...], h2,
                              dimension_numbers=(((1,), (1,)), ((), ())),
                              preferred_element_type=jnp.float32,
                              precision=p3)                          # (1, TB)
        o_ref[0, :, :] = row + b3_ref[0]                             # SMEM scalar bias
    return v_kernel


def _choose_batch_tile(B, block_b):
    """Pick a batch tile obeying the (8,128) rule (multiple of 8 or == full dim),
    aiming for >=2 grid steps when B >= 16 so both v7x TensorCores get work."""
    if B < 16:
        return B                                   # single full-array block
    tb = -(-B // 2)                                # cdiv(B, 2): >= 2 blocks
    tb = ((tb + 7) // 8) * 8                       # sublane-aligned
    cap = max(8, (block_b // 8) * 8)
    return min(tb, cap)


def v_forward(x, params, *, block_b=2048, input_dtype=None, tanh_dtype=None):
    """x: (B, state_dim); params: weights stored (in, out), biases (1, out).

    Returns (B, 1) f32, matching torch V.forward.
      input_dtype=jnp.bfloat16 : store x/w1 in bf16 (halves dominant HBM traffic).
      tanh_dtype               : dtype for bias-add + tanh; None -> auto per device
                                 (bf16 on v6e/v7x, f32 on v5e and older).
    """
    B, S = x.shape
    H = params["w1"].shape[1]
    H2 = params["w2"].shape[1]

    if tanh_dtype is None:
        tanh_dtype = _default_tanh_dtype()
    tanh_dtype = jnp.dtype(tanh_dtype)
    bf16_act = tanh_dtype == jnp.dtype(jnp.bfloat16)

    mxu_in_dtype = jnp.dtype(input_dtype) if input_dtype is not None else jnp.dtype(jnp.float32)
    x = x.astype(mxu_in_dtype)
    w1 = params["w1"].astype(mxu_in_dtype)
    # w2 / w3 follow the activation dtype so bf16 h1/h2 feed the MXU directly.
    w2_dtype = jnp.bfloat16 if (bf16_act or mxu_in_dtype == jnp.dtype(jnp.bfloat16)) else jnp.float32
    w2 = params["w2"].astype(w2_dtype)
    w3_dtype = jnp.bfloat16 if bf16_act else jnp.float32
    w3_row = params["w3"].reshape(1, H2).astype(w3_dtype)
    b1 = params["b1"].astype(tanh_dtype)
    b2 = params["b2"].astype(tanh_dtype)
    b3 = params["b3"].reshape(1).astype(jnp.float32)

    # Batch tiling: no host-side pad; the last block runs ragged (Pallas clamps
    # the boundary DMA) and the wrapper's [:B] slice drops the junk rows.
    tb = _choose_batch_tile(B, block_b)
    nb = pl.cdiv(B, tb)

    cost = pl.CostEstimate(
        flops=2 * B * (S * H + H * H2 + H2),
        transcendentals=B * (H + H2),
        bytes_accessed=(x.size * x.dtype.itemsize
                        + w1.size * w1.dtype.itemsize
                        + w2.size * w2.dtype.itemsize
                        + b1.size * b1.dtype.itemsize + b2.size * b2.dtype.itemsize
                        + w3_row.size * w3_row.dtype.itemsize + 4 * b3.size
                        + 4 * B),
    )

    out = pl.pallas_call(
        make_v_kernel(tanh_dtype),
        out_shape=jax.ShapeDtypeStruct((nb, 1, tb), jnp.float32),
        grid=(nb,),
        in_specs=[
            pl.BlockSpec((tb, S), lambda i: (i, 0)),             # x: batch-tiled
            pl.BlockSpec((S, H), lambda i: (0, 0)),              # w1: VMEM-resident
            pl.BlockSpec((1, H), lambda i: (0, 0)),              # b1
            pl.BlockSpec((H, H2), lambda i: (0, 0)),             # w2
            pl.BlockSpec((1, H2), lambda i: (0, 0)),             # b2
            pl.BlockSpec((1, H2), lambda i: (0, 0)),             # w3 as a row
            pl.BlockSpec(memory_space=pltpu.MemorySpace.SMEM),   # b3 scalar
        ],
        out_specs=pl.BlockSpec((1, 1, tb), lambda i: (i, 0, 0)),  # lane-dense rows
        compiler_params=pltpu.CompilerParams(
            dimension_semantics=("parallel",)),                   # 2 TCs on v7x
        cost_estimate=cost,
    )(x, w1, b1, w2, b2, w3_row, b3)

    # (nb, 1, tb) rows -> flat column, drop the ragged-tail junk rows.
    return out.reshape(nb * tb, 1)[:B]


def init_params(key, state_dim, hidden_dim=64):
    """Deterministic init mimicking torch.nn.Linear (U[-1/sqrt(in), 1/sqrt(in)]).
    Weights stored as (in, out) = torch_weight.T; biases as (1, out)."""
    dims = [(state_dim, hidden_dim), (hidden_dim, hidden_dim // 2), (hidden_dim // 2, 1)]
    params = {}
    for i, (din, dout) in enumerate(dims, start=1):
        key, kw, kb = jax.random.split(key, 3)
        bound = 1.0 / jnp.sqrt(jnp.float32(din))
        params[f"w{i}"] = jax.random.uniform(kw, (din, dout), jnp.float32, -bound, bound)
        params[f"b{i}"] = jax.random.uniform(kb, (1, dout), jnp.float32, -bound, bound)
    return params


def v_reference(x, params):
    hp = lax.Precision.HIGHEST
    h1 = jnp.tanh(jnp.dot(x, params["w1"], precision=hp) + params["b1"])
    h2 = jnp.tanh(jnp.dot(h1, params["w2"], precision=hp) + params["b2"])
    return jnp.dot(h2, params["w3"], precision=hp) + params["b3"]


if __name__ == "__main__":
    key = jax.random.PRNGKey(0)
    state_dim, hidden_dim = 32, 64

    key, kx = jax.random.split(key)
    params = init_params(key, state_dim, hidden_dim)

    # 1) Small batch: single full-array block, pure f32 + HIGHEST precision.
    x_small = jax.random.normal(kx, (8, state_dim), jnp.float32)
    out_small = jax.block_until_ready(
        v_forward(x_small, params, tanh_dtype=jnp.float32))
    ref_small = v_reference(x_small, params)
    assert out_small.shape == (8, 1)
    assert jnp.allclose(out_small, ref_small, atol=1e-4, rtol=1e-4)

    # 2) Multi-block batch with a small tile cap: exercises the batch grid,
    #    VMEM-resident weights, lane-dense output and the ragged last block
    #    (600 rows -> 3 blocks of 256, no host-side pad).  Strict f32 check.
    key, kx2 = jax.random.split(key)
    x_big = jax.random.normal(kx2, (600, state_dim), jnp.float32)
    out_big = jax.block_until_ready(
        v_forward(x_big, params, block_b=256, tanh_dtype=jnp.float32))
    ref_big = v_reference(x_big, params)
    assert out_big.shape == (600, 1)
    assert jnp.allclose(out_big, ref_big, atol=1e-4, rtol=1e-4)

    # 3) Auto per-generation settings (bf16 bias-add/tanh on v6e/v7x, f32 on v5e)
    #    plus bf16 storage of x/w1; default block_b gives 2 blocks of 304 so both
    #    v7x TensorCores work.  Loose check since inputs/activations are rounded.
    out_auto = jax.block_until_ready(
        v_forward(x_big, params, input_dtype=jnp.bfloat16))
    assert out_auto.shape == (600, 1)
    assert jnp.allclose(out_auto, ref_big, atol=1e-1, rtol=1e-1)

    print("KERNEL_OK")
</pallas_src>

<mosaic_0001>
module attributes {stable_mosaic.version = 11 : i64} {
  func.func @v_kernel(%arg0: i32, %arg1: memref<8x32xf32, #tpu.memory_space<vmem>>, %arg2: memref<32x64xf32, #tpu.memory_space<vmem>>, %arg3: memref<1x64xf32, #tpu.memory_space<vmem>>, %arg4: memref<64x32xf32, #tpu.memory_space<vmem>>, %arg5: memref<1x32xf32, #tpu.memory_space<vmem>>, %arg6: memref<1x32xf32, #tpu.memory_space<vmem>>, %arg7: memref<1xf32, #tpu.memory_space<smem>>, %arg8: memref<1x1x8xf32, #tpu.memory_space<vmem>>) attributes {dimension_semantics = [#tpu.dimension_semantics<parallel>], iteration_bounds = array<i64: 1>, scalar_prefetch = 0 : i64, scratch_operands = 0 : i64, tpu.core_type = #tpu.core_type<tc>, window_params = [{transform_indices = @transform_0, window_bounds = array<i64: 8, 32>}, {pipeline_mode = #tpu.pipeline_mode<synchronous>, transform_indices = @transform_1, window_bounds = array<i64: 32, 64>}, {pipeline_mode = #tpu.pipeline_mode<synchronous>, transform_indices = @transform_2, window_bounds = array<i64: 1, 64>}, {pipeline_mode = #tpu.pipeline_mode<synchronous>, transform_indices = @transform_3, window_bounds = array<i64: 64, 32>}, {pipeline_mode = #tpu.pipeline_mode<synchronous>, transform_indices = @transform_4, window_bounds = array<i64: 1, 32>}, {pipeline_mode = #tpu.pipeline_mode<synchronous>, transform_indices = @transform_5, window_bounds = array<i64: 1, 32>}, {transform_indices = @transform_6, window_bounds = array<i64: 1>}, {transform_indices = @transform_7, window_bounds = array<i64: 1, 1, 8>}]} {
    %c0 = arith.constant 0 : index
    %c0_0 = arith.constant 0 : index
    %0 = vector.load %arg1[%c0, %c0_0] : memref<8x32xf32, #tpu.memory_space<vmem>>, vector<8x32xf32>
    %c0_1 = arith.constant 0 : index
    %c0_2 = arith.constant 0 : index
    %1 = vector.load %arg2[%c0_1, %c0_2] : memref<32x64xf32, #tpu.memory_space<vmem>>, vector<32x64xf32>
    %cst = arith.constant dense<0.000000e+00> : vector<8x64xf32>
    %2 = tpu.matmul %0, %1, %cst {dimension_numbers = #tpu.dot_dimension_numbers<[1], [0], [0], [1], [0, 0, 1, 1], [], []>, precision = #tpu.contract_precision<fp32>} : vector<8x32xf32>, vector<32x64xf32>, vector<8x64xf32> -> vector<8x64xf32>
    %c0_3 = arith.constant 0 : index
    %c0_4 = arith.constant 0 : index
    %3 = vector.load %arg3[%c0_3, %c0_4] : memref<1x64xf32, #tpu.memory_space<vmem>>, vector<1x64xf32>
    %4 = vector.broadcast %3 : vector<1x64xf32> to vector<8x64xf32>
    %5 = arith.addf %2, %4 : vector<8x64xf32>
    %6 = math.tanh %5 : vector<8x64xf32>
    %c0_5 = arith.constant 0 : index
    %c0_6 = arith.constant 0 : index
    %7 = vector.load %arg4[%c0_5, %c0_6] : memref<64x32xf32, #tpu.memory_space<vmem>>, vector<64x32xf32>
    %cst_7 = arith.constant dense<0.000000e+00> : vector<8x32xf32>
    %8 = tpu.matmul %6, %7, %cst_7 {dimension_numbers = #tpu.dot_dimension_numbers<[1], [0], [0], [1], [0, 0, 1, 1], [], []>, precision = #tpu.contract_precision<fp32>} : vector<8x64xf32>, vector<64x32xf32>, vector<8x32xf32> -> vector<8x32xf32>
    %c0_8 = arith.constant 0 : index
    %c0_9 = arith.constant 0 : index
    %9 = vector.load %arg5[%c0_8, %c0_9] : memref<1x32xf32, #tpu.memory_space<vmem>>, vector<1x32xf32>
    %10 = vector.broadcast %9 : vector<1x32xf32> to vector<8x32xf32>
    %11 = arith.addf %8, %10 : vector<8x32xf32>
    %12 = math.tanh %11 : vector<8x32xf32>
    %c0_10 = arith.constant 0 : index
    %c0_11 = arith.constant 0 : index
    %13 = vector.load %arg6[%c0_10, %c0_11] : memref<1x32xf32, #tpu.memory_space<vmem>>, vector<1x32xf32>
    %cst_12 = arith.constant dense<0.000000e+00> : vector<1x8xf32>
    %14 = tpu.matmul %13, %12, %cst_12 {dimension_numbers = #tpu.dot_dimension_numbers<[1], [1], [0], [0], [0, 0, 1, 0], [], []>, precision = #tpu.contract_precision<fp32>} : vector<1x32xf32>, vector<8x32xf32>, vector<1x8xf32> -> vector<1x8xf32>
    %c0_13 = arith.constant 0 : index
    %15 = memref.load %arg7[%c0_13] : memref<1xf32, #tpu.memory_space<smem>>
    %16 = vector.broadcast %15 : f32 to vector<1x8xf32>
    %17 = arith.addf %14, %16 : vector<1x8xf32>
    %c0_14 = arith.constant 0 : index
    %c0_15 = arith.constant 0 : index
    %c0_16 = arith.constant 0 : index
    %18 = vector.load %arg8[%c0_14, %c0_15, %c0_16] : memref<1x1x8xf32, #tpu.memory_space<vmem>>, vector<1x1x8xf32>
    %19 = vector.shape_cast %18 : vector<1x1x8xf32> to vector<1x8xf32>
    %20 = vector.shape_cast %17 : vector<1x8xf32> to vector<1x1x8xf32>
    tpu.vector_store %arg8[%c0_14, %c0_15, %c0_16], %20 {strides = array<i32>} : memref<1x1x8xf32, #tpu.memory_space<vmem>>, vector<1x1x8xf32>,
    return
  }
  func.func @transform_0(%arg0: i32) -> (i32, i32) {
    %c0_i32 = arith.constant 0 : i32
    %c0_i32_0 = arith.constant 0 : i32
    return %arg0, %c0_i32 : i32, i32
  }
  func.func @transform_1(%arg0: i32) -> (i32, i32) {
    %c0_i32 = arith.constant 0 : i32
    %c0_i32_0 = arith.constant 0 : i32
    %c0_i32_1 = arith.constant 0 : i32
    return %c0_i32, %c0_i32_0 : i32, i32
  }
  func.func @transform_2(%arg0: i32) -> (i32, i32) {
    %c0_i32 = arith.constant 0 : i32
    %c0_i32_0 = arith.constant 0 : i32
    %c0_i32_1 = arith.constant 0 : i32
    return %c0_i32, %c0_i32_0 : i32, i32
  }
  func.func @transform_3(%arg0: i32) -> (i32, i32) {
    %c0_i32 = arith.constant 0 : i32
    %c0_i32_0 = arith.constant 0 : i32
    %c0_i32_1 = arith.constant 0 : i32
    return %c0_i32, %c0_i32_0 : i32, i32
  }
  func.func @transform_4(%arg0: i32) -> (i32, i32) {
    %c0_i32 = arith.constant 0 : i32
    %c0_i32_0 = arith.constant 0 : i32
    %c0_i32_1 = arith.constant 0 : i32
    return %c0_i32, %c0_i32_0 : i32, i32
  }
  func.func @transform_5(%arg0: i32) -> (i32, i32) {
    %c0_i32 = arith.constant 0 : i32
    %c0_i32_0 = arith.constant 0 : i32
    %c0_i32_1 = arith.constant 0 : i32
    return %c0_i32, %c0_i32_0 : i32, i32
  }
  func.func @transform_6(%arg0: i32) -> i32 {
    %c0_i32 = arith.constant 0 : i32
    %c0_i32_0 = arith.constant 0 : i32
    return %c0_i32 : i32
  }
  func.func @transform_7(%arg0: i32) -> (i32, i32, i32) {
    %c0_i32 = arith.constant 0 : i32
    %c0_i32_0 = arith.constant 0 : i32
    %c0_i32_1 = arith.constant 0 : i32
    return %arg0, %c0_i32, %c0_i32_0 : i32, i32, i32
  }
}

</mosaic_0001>

<llo_original>
// kernel: tpu_custom_call.1
$region0: #{tpu_custom_call.1}
  #allocation0 [shape = 'u32[]', space=smem, size = 0x4, offset = 0x4, fixed_abs, tag = 'smem constant byte address 0x4 - core index']
  #allocation1 [shape = 'u32[144,128]{1,0:T(1,128)}', space=vmem, size = 0x12000, scoped, tag = 'internal scratch']
  #allocation2 [shape = 'f32[1]{0:T(128)S(6)}', space=smem, size = 0x200, scoped, tag = 'scoped memory for tpu_custom_call.1']
  %s0 = inlined_call_operand.vmem [shape: f32[8,32], index: 0, kind: input, shape index: {}]
  %s1 = inlined_call_operand.vmem [shape: f32[32,64], index: 1, kind: input, shape index: {}]
  %s2 = inlined_call_operand.vmem [shape: f32[1,64], index: 2, kind: input, shape index: {}]
  %s3 = inlined_call_operand.vmem [shape: f32[64,32], index: 3, kind: input, shape index: {}]
  %s4 = inlined_call_operand.vmem [shape: f32[1,32], index: 4, kind: input, shape index: {}]
  %s5 = inlined_call_operand.vmem [shape: f32[1,32], index: 5, kind: input, shape index: {}]
  %s6 = inlined_call_operand.<no memory space> [shape: f32[1], index: 6, kind: input, shape index: {}]
  %s7 = inlined_call_operand.hbm [shape: f32[1,1,8], index: 7, kind: output, shape index: {}]
  %s8 = sld [smem:[#allocation0]]
  $region38: #{tpu_custom_call.1} parent=0
    _
  %s10 = ssub.s32 1, %s8
  %s11 = scalar_select 0, %s10, %s8
  %12 = sst [smem:[#allocation2]] %s6
  $region1: #{tpu_custom_call.1} parent=0
    #allocation3 [shape = 'u8[512]{0}', space=vmem, size = 0x400, scoped, tag = 'output window, operand 0, single buffered']
    #allocation4 [shape = 's32[1]{0}', space=sflag, size = 0x4, scoped, tag = 'scoped memory for tpu_custom_call.1']
    %13 = vsyncpa [#allocation4], 0
    // Predicated region
    $region2: #{tpu_custom_call.1} parent=1 // pred_check
      _
    $region3: #{tpu_custom_call.1} parent=1 // pred_check_branch
      %15 = sbr.rel (0) target = $region5
    $region4: #{tpu_custom_call.1} parent=1 // pred_region
      _
    $region5: #{tpu_custom_call.1} parent=1 // pred_fallthru
      _
    // Predicated region
    $region6: #{tpu_custom_call.1} parent=1 // pred_check
      _
    $region7: #{tpu_custom_call.1} parent=1 // pred_check_branch
      %17 = sbr.rel (0) target = $region9
    $region8: #{tpu_custom_call.1} parent=1 // pred_region
      _
    $region9: #{tpu_custom_call.1} parent=1 // pred_fallthru
      _
    // Predicated region
    $region10: #{tpu_custom_call.1} parent=1 // pred_check
      _
    $region11: #{tpu_custom_call.1} parent=1 // pred_check_branch
      %19 = sbr.rel (0) target = $region13
    $region12: #{tpu_custom_call.1} parent=1 // pred_region
      _
    $region13: #{tpu_custom_call.1} parent=1 // pred_fallthru
      _
    // Predicated region
    $region14: #{tpu_custom_call.1} parent=1 // pred_check
      _
    $region15: #{tpu_custom_call.1} parent=1 // pred_check_branch
      %21 = sbr.rel (0) target = $region17
    $region16: #{tpu_custom_call.1} parent=1 // pred_region
      _
    $region17: #{tpu_custom_call.1} parent=1 // pred_fallthru
      _
    // Predicated region
    $region18: #{tpu_custom_call.1} parent=1 // pred_check
      _
    $region19: #{tpu_custom_call.1} parent=1 // pred_check_branch
      %23 = sbr.rel (0) target = $region21
    $region20: #{tpu_custom_call.1} parent=1 // pred_region
      _
    $region21: #{tpu_custom_call.1} parent=1 // pred_fallthru
      _
    // Predicated region
    $region22: #{tpu_custom_call.1} parent=1 // pred_check
      _
    $region23: #{tpu_custom_call.1} parent=1 // pred_check_branch
      %25 = sbr.rel (0) target = $region25
    $region24: #{tpu_custom_call.1} parent=1 // pred_region
      _
    $region25: #{tpu_custom_call.1} parent=1 // pred_fallthru
      _
    // Predicated region
    $region26: #{tpu_custom_call.1} parent=1 // pred_check
      _
    $region27: #{tpu_custom_call.1} parent=1 // pred_check_branch
      %27 = sbr.rel (0) target = $region29
    $region28: #{tpu_custom_call.1} parent=1 // pred_region
      _
    $region29: #{tpu_custom_call.1} parent=1 // pred_fallthru
      _
    %v28 = vld [vmem:[%s0] sm:$0xff]
    %v29 = vld [vmem:[%s1] sm:$0xff]
    %v30 = vld [vmem:[%s1 + $0x8] sm:$0xff]
    %v31 = vld [vmem:[%s1 + $0x10] sm:$0xff]
    %v32 = vld [vmem:[%s1 + $0x18] sm:$0xff]
    %v33 = vld [vmem:[%s2] sm:$0x1]
    %v35 = vlaneseq
    %v36 = vshrl.u32 %v35, 7
    %v37 = vsub.s32 0, %v36
    %v38 = vrot.slane %v33, %v37
    %vm40 = vcmask 261120
    %v42 = vsel %vm40, %v28, 0
    %44 = vmatprep.subr.mxu0 0.0
    %v45 = vand.u32 %v29, 4294901760
    %46 = vmatpush1.msra.mxu0 %v45
    %47 = vmatprep.subr.mxu0 0.0
    %v48 = vand.u32 %v30, 4294901760
    %49 = vmatpush1.msra.mxu0 %v48
    %50 = vmatprep.subr.mxu0 0.0
    %v51 = vand.u32 %v31, 4294901760
    %52 = vmatpush1.msra.mxu0 %v51
    %53 = vmatprep.subr.mxu0 0.0
    %v54 = vand.u32 %v32, 4294901760
    %55 = vmatpush1.msra.mxu0 %v54
    %56 = vmatprep.subr.mxu0 0.0
    %57 = vmatpush1.msra.mxu0 0.0
    %58 = vmatprep.subr.mxu0 0.0
    %59 = vmatpush1.msra.mxu0 0.0
    %60 = vmatprep.subr.mxu0 0.0
    %61 = vmatpush1.msra.mxu0 0.0
    %62 = vmatprep.subr.mxu0 0.0
    %63 = vmatpush1.msra.mxu0 0.0
    %64 = vmatprep.subr.mxu0 0.0
    %65 = vmatpush1.msra.mxu0 0.0
    %66 = vmatprep.subr.mxu0 0.0
    %67 = vmatpush1.msra.mxu0 0.0
    %68 = vmatprep.subr.mxu0 0.0
    %69 = vmatpush1.msra.mxu0 0.0
    %70 = vmatprep.subr.mxu0 0.0
    %71 = vmatpush1.msra.mxu0 0.0
    %72 = vmatprep.subr.mxu0 0.0
    %73 = vmatpush1.msra.mxu0 0.0
    %74 = vmatprep.subr.mxu0 0.0
    %75 = vmatpush1.msra.mxu0 0.0
    %76 = vmatprep.subr.mxu0 0.0
    %77 = vmatpush1.msra.mxu0 0.0
    %78 = vmatprep.subr.mxu0 0.0
    %79 = vmatpush1.msra.mxu0 0.0
    %80 = vmatprep.subr.mxu0 0.0
    %81 = vmatpush1.msra.mxu0 0.0
    %82 = vmatprep.subr.mxu0 0.0
    %83 = vmatpush1.msra.mxu0 0.0
    %84 = vmatprep.subr.mxu0 0.0
    %85 = vmatpush1.msra.mxu0 0.0
    %86 = vmatprep.subr.mxu0 0.0
    %87 = vmatpush1.msra.mxu0 0.0
    %88 = vmatprep.subr.mxu0 0.0
    %89 = vmatpush1.msra.mxu0 0.0
    %90 = vmatprep.subr.mxu0 0.0
    %91 = vmatpush1.msra.mxu0 0.0
    %92 = vmatprep.subr.mxu0 0.0
    %93 = vmatpush1.msra.mxu0 0.0
    %94 = vmatprep.subr.mxu0 0.0
    %95 = vmatpush1.msra.mxu0 0.0
    %96 = vmatprep.subr.mxu0 0.0
    %97 = vmatpush1.msra.mxu0 0.0
    %98 = vmatprep.subr.mxu0 0.0
    %99 = vmatpush1.msra.mxu0 0.0
    %100 = vmatprep.subr.mxu0 0.0
    %101 = vmatpush1.msra.mxu0 0.0
    %102 = vmatprep.subr.mxu0 0.0
    %103 = vmatpush1.msra.mxu0 0.0
    %104 = vmatprep.subr.mxu0 0.0
    %105 = vmatpush1.msra.mxu0 0.0
    %106 = vmatprep.subr.mxu0 0.0
    %107 = vmatpush1.msra.mxu0 0.0
    %108 = vmatprep.subr.mxu0 0.0
    %109 = vmatpush1.msra.mxu0 0.0
    %110 = vmatprep.subr.mxu0 0.0
    %111 = vmatpush1.msra.mxu0 0.0
    %112 = vmatprep.mubr.f32.mxu0 0.0
    %v113 = vand.u32 %v42, 4294901760
    %v114 = vsub.f32 %v42, %v113
    %v115 = vand.u32 %v114, 4294901760
    %v116 = vsub.f32 %v114, %v115
    %v117 = vand.u32 %v116, 4294901760
    %118 = vmatmul.mubr.f32.gmra.mrb[0].mxu0 %v117
    %v119 = vpop.f32.mrb[0].mxu0
    %v120 = vadd.f32 %v38, %v119
    %v121 = vpop.f32.mrb[0].mxu0
    %122 = vdwg.mxu0
    %123 = vmatprep.subr.mxu0 0.0
    %v124 = vand.u32 %v29, 4294901760
    %v125 = vsub.f32 %v29, %v124
    %v126 = vand.u32 %v125, 4294901760
    %v127 = vsub.f32 %v125, %v126
    %v128 = vand.u32 %v127, 4294901760
    %129 = vmatpush1.msra.mxu0 %v128
    %130 = vmatprep.subr.mxu0 0.0
    %v131 = vand.u32 %v30, 4294901760
    %v132 = vsub.f32 %v30, %v131
    %v133 = vand.u32 %v132, 4294901760
    %v134 = vsub.f32 %v132, %v133
    %v135 = vand.u32 %v134, 4294901760
    %136 = vmatpush1.msra.mxu0 %v135
    %137 = vmatprep.subr.mxu0 0.0
    %v138 = vand.u32 %v31, 4294901760
    %v139 = vsub.f32 %v31, %v138
    %v140 = vand.u32 %v139, 4294901760
    %v141 = vsub.f32 %v139, %v140
    %v142 = vand.u32 %v141, 4294901760
    %143 = vmatpush1.msra.mxu0 %v142
    %144 = vmatprep.subr.mxu0 0.0
    %v145 = vand.u32 %v32, 4294901760
    %v146 = vsub.f32 %v32, %v145
    %v147 = vand.u32 %v146, 4294901760
    %v148 = vsub.f32 %v146, %v147
    %v149 = vand.u32 %v148, 4294901760
    %150 = vmatpush1.msra.mxu0 %v149
    %151 = vmatprep.subr.mxu0 0.0
    %152 = vmatpush1.msra.mxu0 0.0
    %153 = vmatprep.subr.mxu0 0.0
    %154 = vmatpush1.msra.mxu0 0.0
    %155 = vmatprep.subr.mxu0 0.0
    %156 = vmatpush1.msra.mxu0 0.0
    %157 = vmatprep.subr.mxu0 0.0
    %158 = vmatpush1.msra.mxu0 0.0
    %159 = vmatprep.subr.mxu0 0.0
    %160 = vmatpush1.msra.mxu0 0.0
    %161 = vmatprep.subr.mxu0 0.0
    %162 = vmatpush1.msra.mxu0 0.0
    %163 = vmatprep.subr.mxu0 0.0
    %164 = vmatpush1.msra.mxu0 0.0
    %165 = vmatprep.subr.mxu0 0.0
    %166 = vmatpush1.msra.mxu0 0.0
    %167 = vmatprep.subr.mxu0 0.0
    %168 = vmatpush1.msra.mxu0 0.0
    %169 = vmatprep.subr.mxu0 0.0
    %170 = vmatpush1.msra.mxu0 0.0
    %171 = vmatprep.subr.mxu0 0.0
    %172 = vmatpush1.msra.mxu0 0.0
    %173 = vmatprep.subr.mxu0 0.0
    %174 = vmatpush1.msra.mxu0 0.0
    %175 = vmatprep.subr.mxu0 0.0
    %176 = vmatpush1.msra.mxu0 0.0
    %177 = vmatprep.subr.mxu0 0.0
    %178 = vmatpush1.msra.mxu0 0.0
    %179 = vmatprep.subr.mxu0 0.0
    %180 = vmatpush1.msra.mxu0 0.0
    %181 = vmatprep.subr.mxu0 0.0
    %182 = vmatpush1.msra.mxu0 0.0
    %183 = vmatprep.subr.mxu0 0.0
    %184 = vmatpush1.msra.mxu0 0.0
    %185 = vmatprep.subr.mxu0 0.0
    %186 = vmatpush1.msra.mxu0 0.0
    %187 = vmatprep.subr.mxu0 0.0
    %188 = vmatpush1.msra.mxu0 0.0
    %189 = vmatprep.subr.mxu0 0.0
    %190 = vmatpush1.msra.mxu0 0.0
    %191 = vmatprep.subr.mxu0 0.0
    %192 = vmatpush1.msra.mxu0 0.0
    %193 = vmatprep.subr.mxu0 0.0
    %194 = vmatpush1.msra.mxu0 0.0
    %195 = vmatprep.subr.mxu0 0.0
    %196 = vmatpush1.msra.mxu0 0.0
    %197 = vmatprep.subr.mxu0 0.0
    %198 = vmatpush1.msra.mxu0 0.0
    %199 = vmatprep.subr.mxu0 0.0
    %200 = vmatpush1.msra.mxu0 0.0
    %201 = vmatprep.subr.mxu0 0.0
    %202 = vmatpush1.msra.mxu0 0.0
    %203 = vmatprep.subr.mxu0 0.0
    %204 = vmatpush1.msra.mxu0 0.0
    %205 = vmatprep.subr.mxu0 0.0
    %206 = vmatpush1.msra.mxu0 0.0
    %207 = vmatprep.mubr.f32.mxu0 0.0
    %v208 = vand.u32 %v42, 4294901760
    %209 = vmatmul.mubr.f32.gmra.mrb[0].mxu0 %v208
    %v210 = vpop.f32.mrb[0].mxu0
    %v211 = vadd.f32 %v120, %v210
    %v212 = vpop.f32.mrb[0].mxu0
    %213 = vdwg.mxu0
    %214 = vmatprep.subr.mxu0 0.0
    %v215 = vand.u32 %v29, 4294901760
    %v216 = vsub.f32 %v29, %v215
    %217 = vmatpush1.msra.mxu0 %v216
    %218 = vmatprep.subr.mxu0 0.0
    %v219 = vand.u32 %v30, 4294901760
    %v220 = vsub.f32 %v30, %v219
    %221 = vmatpush1.msra.mxu0 %v220
    %222 = vmatprep.subr.mxu0 0.0
    %v223 = vand.u32 %v31, 4294901760
    %v224 = vsub.f32 %v31, %v223
    %225 = vmatpush1.msra.mxu0 %v224
    %226 = vmatprep.subr.mxu0 0.0
    %v227 = vand.u32 %v32, 4294901760
    %v228 = vsub.f32 %v32, %v227
    %229 = vmatpush1.msra.mxu0 %v228
    %230 = vmatprep.subr.mxu0 0.0
    %231 = vmatpush1.msra.mxu0 0.0
    %232 = vmatprep.subr.mxu0 0.0
    %233 = vmatpush1.msra.mxu0 0.0
    %234 = vmatprep.subr.mxu0 0.0
    %235 = vmatpush1.msra.mxu0 0.0
    %236 = vmatprep.subr.mxu0 0.0
    %237 = vmatpush1.msra.mxu0 0.0
    %238 = vmatprep.subr.mxu0 0.0
    %239 = vmatpush1.msra.mxu0 0.0
    %240 = vmatprep.subr.mxu0 0.0
    %241 = vmatpush1.msra.mxu0 0.0
    %242 = vmatprep.subr.mxu0 0.0
    %243 = vmatpush1.msra.mxu0 0.0
    %244 = vmatprep.subr.mxu0 0.0
    %245 = vmatpush1.msra.mxu0 0.0
    %246 = vmatprep.subr.mxu0 0.0
    %247 = vmatpush1.msra.mxu0 0.0
    %248 = vmatprep.subr.mxu0 0.0
    %249 = vmatpush1.msra.mxu0 0.0
    %250 = vmatprep.subr.mxu0 0.0
    %251 = vmatpush1.msra.mxu0 0.0
    %252 = vmatprep.subr.mxu0 0.0
    %253 = vmatpush1.msra.mxu0 0.0
    %254 = vmatprep.subr.mxu0 0.0
    %255 = vmatpush1.msra.mxu0 0.0
    %256 = vmatprep.subr.mxu0 0.0
    %257 = vmatpush1.msra.mxu0 0.0
    %258 = vmatprep.subr.mxu0 0.0
    %259 = vmatpush1.msra.mxu0 0.0
    %260 = vmatprep.subr.mxu0 0.0
    %261 = vmatpush1.msra.mxu0 0.0
    %262 = vmatprep.subr.mxu0 0.0
    %263 = vmatpush1.msra.mxu0 0.0
    %264 = vmatprep.subr.mxu0 0.0
    %265 = vmatpush1.msra.mxu0 0.0
    %266 = vmatprep.subr.mxu0 0.0
    %267 = vmatpush1.msra.mxu0 0.0
    %268 = vmatprep.subr.mxu0 0.0
    %269 = vmatpush1.msra.mxu0 0.0
    %270 = vmatprep.subr.mxu0 0.0
    %271 = vmatpush1.msra.mxu0 0.0
    %272 = vmatprep.subr.mxu0 0.0
    %273 = vmatpush1.msra.mxu0 0.0
    %274 = vmatprep.subr.mxu0 0.0
    %275 = vmatpush1.msra.mxu0 0.0
    %276 = vmatprep.subr.mxu0 0.0
    %277 = vmatpush1.msra.mxu0 0.0
    %278 = vmatprep.subr.mxu0 0.0
    %279 = vmatpush1.msra.mxu0 0.0
    %280 = vmatprep.subr.mxu0 0.0
    %281 = vmatpush1.msra.mxu0 0.0
    %282 = vmatprep.subr.mxu0 0.0
    %283 = vmatpush1.msra.mxu0 0.0
    %284 = vmatprep.subr.mxu0 0.0
    %285 = vmatpush1.msra.mxu0 0.0
    %286 = vmatprep.mubr.f32.mxu0 0.0
    %v287 = vand.u32 %v42, 4294901760
    %v288 = vsub.f32 %v42, %v287
    %289 = vmatmul.mubr.f32.gmra.mrb[0].mxu0 %v288
    %v290 = vpop.f32.mrb[0].mxu0
    %v291 = vadd.f32 %v211, %v290
    %v292 = vpop.f32.mrb[0].mxu0
    %293 = vdwg.mxu0
    %294 = vmatprep.subr.mxu0 0.0
    %v295 = vand.u32 %v29, 4294901760
    %296 = vmatpush1.msra.mxu0 %v295
    %297 = vmatprep.subr.mxu0 0.0
    %v298 = vand.u32 %v30, 4294901760
    %299 = vmatpush1.msra.mxu0 %v298
    %300 = vmatprep.subr.mxu0 0.0
    %v301 = vand.u32 %v31, 4294901760
    %302 = vmatpush1.msra.mxu0 %v301
    %303 = vmatprep.subr.mxu0 0.0
    %v304 = vand.u32 %v32, 4294901760
    %305 = vmatpush1.msra.mxu0 %v304
    %306 = vmatprep.subr.mxu0 0.0
    %307 = vmatpush1.msra.mxu0 0.0
    %308 = vmatprep.subr.mxu0 0.0
    %309 = vmatpush1.msra.mxu0 0.0
    %310 = vmatprep.subr.mxu0 0.0
    %311 = vmatpush1.msra.mxu0 0.0
    %312 = vmatprep.subr.mxu0 0.0
    %313 = vmatpush1.msra.mxu0 0.0
    %314 = vmatprep.subr.mxu0 0.0
    %315 = vmatpush1.msra.mxu0 0.0
    %316 = vmatprep.subr.mxu0 0.0
    %317 = vmatpush1.msra.mxu0 0.0
    %318 = vmatprep.subr.mxu0 0.0
    %319 = vmatpush1.msra.mxu0 0.0
    %320 = vmatprep.subr.mxu0 0.0
    %321 = vmatpush1.msra.mxu0 0.0
    %322 = vmatprep.subr.mxu0 0.0
    %323 = vmatpush1.msra.mxu0 0.0
    %324 = vmatprep.subr.mxu0 0.0
    %325 = vmatpush1.msra.mxu0 0.0
    %326 = vmatprep.subr.mxu0 0.0
    %327 = vmatpush1.msra.mxu0 0.0
    %328 = vmatprep.subr.mxu0 0.0
    %329 = vmatpush1.msra.mxu0 0.0
    %330 = vmatprep.subr.mxu0 0.0
    %331 = vmatpush1.msra.mxu0 0.0
    %332 = vmatprep.subr.mxu0 0.0
    %333 = vmatpush1.msra.mxu0 0.0
    %334 = vmatprep.subr.mxu0 0.0
    %335 = vmatpush1.msra.mxu0 0.0
    %336 = vmatprep.subr.mxu0 0.0
    %337 = vmatpush1.msra.mxu0 0.0
    %338 = vmatprep.subr.mxu0 0.0
    %339 = vmatpush1.msra.mxu0 0.0
    %340 = vmatprep.subr.mxu0 0.0
    %341 = vmatpush1.msra.mxu0 0.0
    %342 = vmatprep.subr.mxu0 0.0
    %343 = vmatpush1.msra.mxu0 0.0
    %344 = vmatprep.subr.mxu0 0.0
    %345 = vmatpush1.msra.mxu0 0.0
    %346 = vmatprep.subr.mxu0 0.0
    %347 = vmatpush1.msra.mxu0 0.0
    %348 = vmatprep.subr.mxu0 0.0
    %349 = vmatpush1.msra.mxu0 0.0
    %350 = vmatprep.subr.mxu0 0.0
    %351 = vmatpush1.msra.mxu0 0.0
    %352 = vmatprep.subr.mxu0 0.0
    %353 = vmatpush1.msra.mxu0 0.0
    %354 = vmatprep.subr.mxu0 0.0
    %355 = vmatpush1.msra.mxu0 0.0
    %356 = vmatprep.subr.mxu0 0.0
    %357 = vmatpush1.msra.mxu0 0.0
    %358 = vmatprep.subr.mxu0 0.0
    %359 = vmatpush1.msra.mxu0 0.0
    %360 = vmatprep.subr.mxu0 0.0
    %361 = vmatpush1.msra.mxu0 0.0
    %362 = vmatprep.mubr.f32.mxu0 0.0
    %v363 = vand.u32 %v42, 4294901760
    %v364 = vsub.f32 %v42, %v363
    %v365 = vand.u32 %v364, 4294901760
    %366 = vmatmul.mubr.f32.gmra.mrb[0].mxu0 %v365
    %v367 = vpop.f32.mrb[0].mxu0
    %v368 = vadd.f32 %v291, %v367
    %v369 = vpop.f32.mrb[0].mxu0
    %370 = vdwg.mxu0
    %371 = vmatprep.subr.mxu0 0.0
    %v372 = vand.u32 %v29, 4294901760
    %v373 = vsub.f32 %v29, %v372
    %v374 = vand.u32 %v373, 4294901760
    %375 = vmatpush1.msra.mxu0 %v374
    %376 = vmatprep.subr.mxu0 0.0
    %v377 = vand.u32 %v30, 4294901760
    %v378 = vsub.f32 %v30, %v377
    %v379 = vand.u32 %v378, 4294901760
    %380 = vmatpush1.msra.mxu0 %v379
    %381 = vmatprep.subr.mxu0 0.0
    %v382 = vand.u32 %v31, 4294901760
    %v383 = vsub.f32 %v31, %v382
    %v384 = vand.u32 %v383, 4294901760
    %385 = vmatpush1.msra.mxu0 %v384
    %386 = vmatprep.subr.mxu0 0.0
    %v387 = vand.u32 %v32, 4294901760
    %v388 = vsub.f32 %v32, %v387
    %v389 = vand.u32 %v388, 4294901760
    %390 = vmatpush1.msra.mxu0 %v389
    %391 = vmatprep.subr.mxu0 0.0
    %392 = vmatpush1.msra.mxu0 0.0
    %393 = vmatprep.subr.mxu0 0.0
    %394 = vmatpush1.msra.mxu0 0.0
    %395 = vmatprep.subr.mxu0 0.0
    %396 = vmatpush1.msra.mxu0 0.0
    %397 = vmatprep.subr.mxu0 0.0
    %398 = vmatpush1.msra.mxu0 0.0
    %399 = vmatprep.subr.mxu0 0.0
    %400 = vmatpush1.msra.mxu0 0.0
    %401 = vmatprep.subr.mxu0 0.0
    %402 = vmatpush1.msra.mxu0 0.0
    %403 = vmatprep.subr.mxu0 0.0
    %404 = vmatpush1.msra.mxu0 0.0
    %405 = vmatprep.subr.mxu0 0.0
    %406 = vmatpush1.msra.mxu0 0.0
    %407 = vmatprep.subr.mxu0 0.0
    %408 = vmatpush1.msra.mxu0 0.0
    %409 = vmatprep.subr.mxu0 0.0
    %410 = vmatpush1.msra.mxu0 0.0
    %411 = vmatprep.subr.mxu0 0.0
    %412 = vmatpush1.msra.mxu0 0.0
    %413 = vmatprep.subr.mxu0 0.0
    %414 = vmatpush1.msra.mxu0 0.0
    %415 = vmatprep.subr.mxu0 0.0
    %416 = vmatpush1.msra.mxu0 0.0
    %417 = vmatprep.subr.mxu0 0.0
    %418 = vmatpush1.msra.mxu0 0.0
    %419 = vmatprep.subr.mxu0 0.0
    %420 = vmatpush1.msra.mxu0 0.0
    %421 = vmatprep.subr.mxu0 0.0
    %422 = vmatpush1.msra.mxu0 0.0
    %423 = vmatprep.subr.mxu0 0.0
    %424 = vmatpush1.msra.mxu0 0.0
    %425 = vmatprep.subr.mxu0 0.0
    %426 = vmatpush1.msra.mxu0 0.0
    %427 = vmatprep.subr.mxu0 0.0
    %428 = vmatpush1.msra.mxu0 0.0
    %429 = vmatprep.subr.mxu0 0.0
    %430 = vmatpush1.msra.mxu0 0.0
    %431 = vmatprep.subr.mxu0 0.0
    %432 = vmatpush1.msra.mxu0 0.0
    %433 = vmatprep.subr.mxu0 0.0
    %434 = vmatpush1.msra.mxu0 0.0
    %435 = vmatprep.subr.mxu0 0.0
    %436 = vmatpush1.msra.mxu0 0.0
    %437 = vmatprep.subr.mxu0 0.0
    %438 = vmatpush1.msra.mxu0 0.0
    %439 = vmatprep.subr.mxu0 0.0
    %440 = vmatpush1.msra.mxu0 0.0
    %441 = vmatprep.subr.mxu0 0.0
    %442 = vmatpush1.msra.mxu0 0.0
    %443 = vmatprep.subr.mxu0 0.0
    %444 = vmatpush1.msra.mxu0 0.0
    %445 = vmatprep.subr.mxu0 0.0
    %446 = vmatpush1.msra.mxu0 0.0
    %447 = vmatprep.mubr.f32.mxu0 0.0
    %v448 = vand.u32 %v42, 4294901760
    %449 = vmatmul.mubr.f32.gmra.mrb[0].mxu0 %v448
    %v450 = vpop.f32.mrb[0].mxu0
    %v451 = vadd.f32 %v368, %v450
    %v452 = vpop.f32.mrb[0].mxu0
    %453 = vdwg.mxu0
    %454 = vmatprep.subr.mxu0 0.0
    %v455 = vand.u32 %v29, 4294901760
    %456 = vmatpush1.msra.mxu0 %v455
    %457 = vmatprep.subr.mxu0 0.0
    %v458 = vand.u32 %v30, 4294901760
    %459 = vmatpush1.msra.mxu0 %v458
    %460 = vmatprep.subr.mxu0 0.0
    %v461 = vand.u32 %v31, 4294901760
    %462 = vmatpush1.msra.mxu0 %v461
    %463 = vmatprep.subr.mxu0 0.0
    %v464 = vand.u32 %v32, 4294901760
    %465 = vmatpush1.msra.mxu0 %v464
    %466 = vmatprep.subr.mxu0 0.0
    %467 = vmatpush1.msra.mxu0 0.0
    %468 = vmatprep.subr.mxu0 0.0
    %469 = vmatpush1.msra.mxu0 0.0
    %470 = vmatprep.subr.mxu0 0.0
    %471 = vmatpush1.msra.mxu0 0.0
    %472 = vmatprep.subr.mxu0 0.0
    %473 = vmatpush1.msra.mxu0 0.0
    %474 = vmatprep.subr.mxu0 0.0
    %475 = vmatpush1.msra.mxu0 0.0
    %476 = vmatprep.subr.mxu0 0.0
    %477 = vmatpush1.msra.mxu0 0.0
    %478 = vmatprep.subr.mxu0 0.0
    %479 = vmatpush1.msra.mxu0 0.0
    %480 = vmatprep.subr.mxu0 0.0
    %481 = vmatpush1.msra.mxu0 0.0
    %482 = vmatprep.subr.mxu0 0.0
    %483 = vmatpush1.msra.mxu0 0.0
    %484 = vmatprep.subr.mxu0 0.0
    %485 = vmatpush1.msra.mxu0 0.0
    %486 = vmatprep.subr.mxu0 0.0
    %487 = vmatpush1.msra.mxu0 0.0
    %488 = vmatprep.subr.mxu0 0.0
    %489 = vmatpush1.msra.mxu0 0.0
    %490 = vmatprep.subr.mxu0 0.0
    %491 = vmatpush1.msra.mxu0 0.0
    %492 = vmatprep.subr.mxu0 0.0
    %493 = vmatpush1.msra.mxu0 0.0
    %494 = vmatprep.subr.mxu0 0.0
    %495 = vmatpush1.msra.mxu0 0.0
    %496 = vmatprep.subr.mxu0 0.0
    %497 = vmatpush1.msra.mxu0 0.0
    %498 = vmatprep.subr.mxu0 0.0
    %499 = vmatpush1.msra.mxu0 0.0
    %500 = vmatprep.subr.mxu0 0.0
    %501 = vmatpush1.msra.mxu0 0.0
    %502 = vmatprep.subr.mxu0 0.0
    %503 = vmatpush1.msra.mxu0 0.0
    %504 = vmatprep.subr.mxu0 0.0
    %505 = vmatpush1.msra.mxu0 0.0
    %506 = vmatprep.subr.mxu0 0.0
    %507 = vmatpush1.msra.mxu0 0.0
    %508 = vmatprep.subr.mxu0 0.0
    %509 = vmatpush1.msra.mxu0 0.0
    %510 = vmatprep.subr.mxu0 0.0
    %511 = vmatpush1.msra.mxu0 0.0
    %512 = vmatprep.subr.mxu0 0.0
    %513 = vmatpush1.msra.mxu0 0.0
    %514 = vmatprep.subr.mxu0 0.0
    %515 = vmatpush1.msra.mxu0 0.0
    %516 = vmatprep.subr.mxu0 0.0
    %517 = vmatpush1.msra.mxu0 0.0
    %518 = vmatprep.subr.mxu0 0.0
    %519 = vmatpush1.msra.mxu0 0.0
    %520 = vmatprep.subr.mxu0 0.0
    %521 = vmatpush1.msra.mxu0 0.0
    %522 = vmatprep.mubr.f32.mxu0 0.0
    %v523 = vand.u32 %v42, 4294901760
    %524 = vmatmul.mubr.f32.gmra.mrb[0].mxu0 %v523
    %v525 = vpop.f32.mrb[0].mxu0
    %v526 = vadd.f32 %v451, %v525
    %v527 = vpop.f32.mrb[0].mxu0
    %528 = vdwg.mxu0
    %v529 = vtanh.pop %v526
    %v530 = vld [vmem:[%s3] sm:$0xff]
    %v531 = vld [vmem:[%s3 + $0x8] sm:$0xff]
    %v532 = vld [vmem:[%s3 + $0x10] sm:$0xff]
    %v533 = vld [vmem:[%s3 + $0x18] sm:$0xff]
    %v534 = vld [vmem:[%s3 + $0x20] sm:$0xff]
    %v535 = vld [vmem:[%s3 + $0x28] sm:$0xff]
    %v536 = vld [vmem:[%s3 + $0x30] sm:$0xff]
    %v537 = vld [vmem:[%s3 + $0x38] sm:$0xff]
    %v538 = vld [vmem:[%s4] sm:$0x1]
    %v540 = vlaneseq
    %v541 = vshrl.u32 %v540, 7
    %v542 = vsub.s32 0, %v541
    %v543 = vrot.slane %v538, %v542
    %vm545 = vcmask 523264
    %v547 = vsel %vm545, %v529, 0
    %549 = vmatprep.subr.mxu0 0.0
    %v550 = vand.u32 %v530, 4294901760
    %551 = vmatpush1.msra.mxu0 %v550
    %552 = vmatprep.subr.mxu0 0.0
    %v553 = vand.u32 %v531, 4294901760
    %554 = vmatpush1.msra.mxu0 %v553
    %555 = vmatprep.subr.mxu0 0.0
    %v556 = vand.u32 %v532, 4294901760
    %557 = vmatpush1.msra.mxu0 %v556
    %558 = vmatprep.subr.mxu0 0.0
    %v559 = vand.u32 %v533, 4294901760
    %560 = vmatpush1.msra.mxu0 %v559
    %561 = vmatprep.subr.mxu0 0.0
    %v562 = vand.u32 %v534, 4294901760
    %563 = vmatpush1.msra.mxu0 %v562
    %564 = vmatprep.subr.mxu0 0.0
    %v565 = vand.u32 %v535, 4294901760
    %566 = vmatpush1.msra.mxu0 %v565
    %567 = vmatprep.subr.mxu0 0.0
    %v568 = vand.u32 %v536, 4294901760
    %569 = vmatpush1.msra.mxu0 %v568
    %570 = vmatprep.subr.mxu0 0.0
    %v571 = vand.u32 %v537, 4294901760
    %572 = vmatpush1.msra.mxu0 %v571
    %573 = vmatprep.subr.mxu0 0.0
    %574 = vmatpush1.msra.mxu0 0.0
    %575 = vmatprep.subr.mxu0 0.0
    %576 = vmatpush1.msra.mxu0 0.0
    %577 = vmatprep.subr.mxu0 0.0
    %578 = vmatpush1.msra.mxu0 0.0
    %579 = vmatprep.subr.mxu0 0.0
    %580 = vmatpush1.msra.mxu0 0.0
    %581 = vmatprep.subr.mxu0 0.0
    %582 = vmatpush1.msra.mxu0 0.0
    %583 = vmatprep.subr.mxu0 0.0
    %584 = vmatpush1.msra.mxu0 0.0
    %585 = vmatprep.subr.mxu0 0.0
    %586 = vmatpush1.msra.mxu0 0.0
    %587 = vmatprep.subr.mxu0 0.0
    %588 = vmatpush1.msra.mxu0 0.0
    %589 = vmatprep.subr.mxu0 0.0
    %590 = vmatpush1.msra.mxu0 0.0
    %591 = vmatprep.subr.mxu0 0.0
    %592 = vmatpush1.msra.mxu0 0.0
    %593 = vmatprep.subr.mxu0 0.0
    %594 = vmatpush1.msra.mxu0 0.0
    %595 = vmatprep.subr.mxu0 0.0
    %596 = vmatpush1.msra.mxu0 0.0
    %597 = vmatprep.subr.mxu0 0.0
    %598 = vmatpush1.msra.mxu0 0.0
    %599 = vmatprep.subr.mxu0 0.0
    %600 = vmatpush1.msra.mxu0 0.0
    %601 = vmatprep.subr.mxu0 0.0
    %602 = vmatpush1.msra.mxu0 0.0
    %603 = vmatprep.subr.mxu0 0.0
    %604 = vmatpush1.msra.mxu0 0.0
    %605 = vmatprep.subr.mxu0 0.0
    %606 = vmatpush1.msra.mxu0 0.0
    %607 = vmatprep.subr.mxu0 0.0
    %608 = vmatpush1.msra.mxu0 0.0
    %609 = vmatprep.subr.mxu0 0.0
    %610 = vmatpush1.msra.mxu0 0.0
    %611 = vmatprep.subr.mxu0 0.0
    %612 = vmatpush1.msra.mxu0 0.0
    %613 = vmatprep.subr.mxu0 0.0
    %614 = vmatpush1.msra.mxu0 0.0
    %615 = vmatprep.subr.mxu0 0.0
    %616 = vmatpush1.msra.mxu0 0.0
    %617 = vmatprep.subr.mxu0 0.0
    %618 = vmatpush1.msra.mxu0 0.0
    %619 = vmatprep.subr.mxu0 0.0
    %620 = vmatpush1.msra.mxu0 0.0
    %621 = vmatprep.mubr.f32.mxu0 0.0
    %v622 = vand.u32 %v547, 4294901760
    %v623 = vsub.f32 %v547, %v622
    %v624 = vand.u32 %v623, 4294901760
    %v625 = vsub.f32 %v623, %v624
    %v626 = vand.u32 %v625, 4294901760
    %627 = vmatmul.mubr.f32.gmra.mrb[0].mxu0 %v626
    %v628 = vpop.f32.mrb[0].mxu0
    %v629 = vadd.f32 %v543, %v628
    %v630 = vpop.f32.mrb[0].mxu0
    %631 = vdwg.mxu0
    %632 = vmatprep.subr.mxu0 0.0
    %v633 = vand.u32 %v530, 4294901760
    %v634 = vsub.f32 %v530, %v633
    %v635 = vand.u32 %v634, 4294901760
    %v636 = vsub.f32 %v634, %v635
    %v637 = vand.u32 %v636, 4294901760
    %638 = vmatpush1.msra.mxu0 %v637
    %639 = vmatprep.subr.mxu0 0.0
    %v640 = vand.u32 %v531, 4294901760
    %v641 = vsub.f32 %v531, %v640
    %v642 = vand.u32 %v641, 4294901760
    %v643 = vsub.f32 %v641, %v642
    %v644 = vand.u32 %v643, 4294901760
    %645 = vmatpush1.msra.mxu0 %v644
    %646 = vmatprep.subr.mxu0 0.0
    %v647 = vand.u32 %v532, 4294901760
    %v648 = vsub.f32 %v532, %v647
    %v649 = vand.u32 %v648, 4294901760
    %v650 = vsub.f32 %v648, %v649
    %v651 = vand.u32 %v650, 4294901760
    %652 = vmatpush1.msra.mxu0 %v651
    %653 = vmatprep.subr.mxu0 0.0
    %v654 = vand.u32 %v533, 4294901760
    %v655 = vsub.f32 %v533, %v654
    %v656 = vand.u32 %v655, 4294901760
    %v657 = vsub.f32 %v655, %v656
    %v658 = vand.u32 %v657, 4294901760
    %659 = vmatpush1.msra.mxu0 %v658
    %660 = vmatprep.subr.mxu0 0.0
    %v661 = vand.u32 %v534, 4294901760
    %v662 = vsub.f32 %v534, %v661
    %v663 = vand.u32 %v662, 4294901760
    %v664 = vsub.f32 %v662, %v663
    %v665 = vand.u32 %v664, 4294901760
    %666 = vmatpush1.msra.mxu0 %v665
    %667 = vmatprep.subr.mxu0 0.0
    %v668 = vand.u32 %v535, 4294901760
    %v669 = vsub.f32 %v535, %v668
    %v670 = vand.u32 %v669, 4294901760
    %v671 = vsub.f32 %v669, %v670
    %v672 = vand.u32 %v671, 4294901760
    %673 = vmatpush1.msra.mxu0 %v672
    %674 = vmatprep.subr.mxu0 0.0
    %v675 = vand.u32 %v536, 4294901760
    %v676 = vsub.f32 %v536, %v675
    %v677 = vand.u32 %v676, 4294901760
    %v678 = vsub.f32 %v676, %v677
    %v679 = vand.u32 %v678, 4294901760
    %680 = vmatpush1.msra.mxu0 %v679
    %681 = vmatprep.subr.mxu0 0.0
    %v682 = vand.u32 %v537, 4294901760
    %v683 = vsub.f32 %v537, %v682
    %v684 = vand.u32 %v683, 4294901760
    %v685 = vsub.f32 %v683, %v684
    %v686 = vand.u32 %v685, 4294901760
    %687 = vmatpush1.msra.mxu0 %v686
    %688 = vmatprep.subr.mxu0 0.0
    %689 = vmatpush1.msra.mxu0 0.0
    %690 = vmatprep.subr.mxu0 0.0
    %691 = vmatpush1.msra.mxu0 0.0
    %692 = vmatprep.subr.mxu0 0.0
    %693 = vmatpush1.msra.mxu0 0.0
    %694 = vmatprep.subr.mxu0 0.0
    %695 = vmatpush1.msra.mxu0 0.0
    %696 = vmatprep.subr.mxu0 0.0
    %697 = vmatpush1.msra.mxu0 0.0
    %698 = vmatprep.subr.mxu0 0.0
    %699 = vmatpush1.msra.mxu0 0.0
    %700 = vmatprep.subr.mxu0 0.0
    %701 = vmatpush1.msra.mxu0 0.0
    %702 = vmatprep.subr.mxu0 0.0
    %703 = vmatpush1.msra.mxu0 0.0
    %704 = vmatprep.subr.mxu0 0.0
    %705 = vmatpush1.msra.mxu0 0.0
    %706 = vmatprep.subr.mxu0 0.0
    %707 = vmatpush1.msra.mxu0 0.0
    %708 = vmatprep.subr.mxu0 0.0
    %709 = vmatpush1.msra.mxu0 0.0
    %710 = vmatprep.subr.mxu0 0.0
    %711 = vmatpush1.msra.mxu0 0.0
    %712 = vmatprep.subr.mxu0 0.0
    %713 = vmatpush1.msra.mxu0 0.0
    %714 = vmatprep.subr.mxu0 0.0
    %715 = vmatpush1.msra.mxu0 0.0
    %716 = vmatprep.subr.mxu0 0.0
    %717 = vmatpush1.msra.mxu0 0.0
    %718 = vmatprep.subr.mxu0 0.0
    %719 = vmatpush1.msra.mxu0 0.0
    %720 = vmatprep.subr.mxu0 0.0
    %721 = vmatpush1.msra.mxu0 0.0
    %722 = vmatprep.subr.mxu0 0.0
    %723 = vmatpush1.msra.mxu0 0.0
    %724 = vmatprep.subr.mxu0 0.0
    %725 = vmatpush1.msra.mxu0 0.0
    %726 = vmatprep.subr.mxu0 0.0
    %727 = vmatpush1.msra.mxu0 0.0
    %728 = vmatprep.subr.mxu0 0.0
    %729 = vmatpush1.msra.mxu0 0.0
    %730 = vmatprep.subr.mxu0 0.0
    %731 = vmatpush1.msra.mxu0 0.0
    %732 = vmatprep.subr.mxu0 0.0
    %733 = vmatpush1.msra.mxu0 0.0
    %734 = vmatprep.subr.mxu0 0.0
    %735 = vmatpush1.msra.mxu0 0.0
    %736 = vmatprep.mubr.f32.mxu0 0.0
    %v737 = vand.u32 %v547, 4294901760
    %738 = vmatmul.mubr.f32.gmra.mrb[0].mxu0 %v737
    %v739 = vpop.f32.mrb[0].mxu0
    %v740 = vadd.f32 %v629, %v739
    %v741 = vpop.f32.mrb[0].mxu0
    %742 = vdwg.mxu0
    %743 = vmatprep.subr.mxu0 0.0
    %v744 = vand.u32 %v530, 4294901760
    %v745 = vsub.f32 %v530, %v744
    %746 = vmatpush1.msra.mxu0 %v745
    %747 = vmatprep.subr.mxu0 0.0
    %v748 = vand.u32 %v531, 4294901760
    %v749 = vsub.f32 %v531, %v748
    %750 = vmatpush1.msra.mxu0 %v749
    %751 = vmatprep.subr.mxu0 0.0
    %v752 = vand.u32 %v532, 4294901760
    %v753 = vsub.f32 %v532, %v752
    %754 = vmatpush1.msra.mxu0 %v753
    %755 = vmatprep.subr.mxu0 0.0
    %v756 = vand.u32 %v533, 4294901760
    %v757 = vsub.f32 %v533, %v756
    %758 = vmatpush1.msra.mxu0 %v757
    %759 = vmatprep.subr.mxu0 0.0
    %v760 = vand.u32 %v534, 4294901760
    %v761 = vsub.f32 %v534, %v760
    %762 = vmatpush1.msra.mxu0 %v761
    %763 = vmatprep.subr.mxu0 0.0
    %v764 = vand.u32 %v535, 4294901760
    %v765 = vsub.f32 %v535, %v764
    %766 = vmatpush1.msra.mxu0 %v765
    %767 = vmatprep.subr.mxu0 0.0
    %v768 = vand.u32 %v536, 4294901760
    %v769 = vsub.f32 %v536, %v768
    %770 = vmatpush1.msra.mxu0 %v769
    %771 = vmatprep.subr.mxu0 0.0
    %v772 = vand.u32 %v537, 4294901760
    %v773 = vsub.f32 %v537, %v772
    %774 = vmatpush1.msra.mxu0 %v773
    %775 = vmatprep.subr.mxu0 0.0
    %776 = vmatpush1.msra.mxu0 0.0
    %777 = vmatprep.subr.mxu0 0.0
    %778 = vmatpush1.msra.mxu0 0.0
    %779 = vmatprep.subr.mxu0 0.0
    %780 = vmatpush1.msra.mxu0 0.0
    %781 = vmatprep.subr.mxu0 0.0
    %782 = vmatpush1.msra.mxu0 0.0
    %783 = vmatprep.subr.mxu0 0.0
    %784 = vmatpush1.msra.mxu0 0.0
    %785 = vmatprep.subr.mxu0 0.0
    %786 = vmatpush1.msra.mxu0 0.0
    %787 = vmatprep.subr.mxu0 0.0
    %788 = vmatpush1.msra.mxu0 0.0
    %789 = vmatprep.subr.mxu0 0.0
    %790 = vmatpush1.msra.mxu0 0.0
    %791 = vmatprep.subr.mxu0 0.0
    %792 = vmatpush1.msra.mxu0 0.0
    %793 = vmatprep.subr.mxu0 0.0
    %794 = vmatpush1.msra.mxu0 0.0
    %795 = vmatprep.subr.mxu0 0.0
    %796 = vmatpush1.msra.mxu0 0.0
    %797 = vmatprep.subr.mxu0 0.0
    %798 = vmatpush1.msra.mxu0 0.0
    %799 = vmatprep.subr.mxu0 0.0
    %800 = vmatpush1.msra.mxu0 0.0
    %801 = vmatprep.subr.mxu0 0.0
    %802 = vmatpush1.msra.mxu0 0.0
    %803 = vmatprep.subr.mxu0 0.0
    %804 = vmatpush1.msra.mxu0 0.0
    %805 = vmatprep.subr.mxu0 0.0
    %806 = vmatpush1.msra.mxu0 0.0
    %807 = vmatprep.subr.mxu0 0.0
    %808 = vmatpush1.msra.mxu0 0.0
    %809 = vmatprep.subr.mxu0 0.0
    %810 = vmatpush1.msra.mxu0 0.0
    %811 = vmatprep.subr.mxu0 0.0
    %812 = vmatpush1.msra.mxu0 0.0
    %813 = vmatprep.subr.mxu0 0.0
    %814 = vmatpush1.msra.mxu0 0.0
    %815 = vmatprep.subr.mxu0 0.0
    %816 = vmatpush1.msra.mxu0 0.0
    %817 = vmatprep.subr.mxu0 0.0
    %818 = vmatpush1.msra.mxu0 0.0
    %819 = vmatprep.subr.mxu0 0.0
    %820 = vmatpush1.msra.mxu0 0.0
    %821 = vmatprep.subr.mxu0 0.0
    %822 = vmatpush1.msra.mxu0 0.0
    %823 = vmatprep.mubr.f32.mxu0 0.0
    %v824 = vand.u32 %v547, 4294901760
    %v825 = vsub.f32 %v547, %v824
    %826 = vmatmul.mubr.f32.gmra.mrb[0].mxu0 %v825
    %v827 = vpop.f32.mrb[0].mxu0
    %v828 = vadd.f32 %v740, %v827
    %v829 = vpop.f32.mrb[0].mxu0
    %830 = vdwg.mxu0
    %831 = vmatprep.subr.mxu0 0.0
    %v832 = vand.u32 %v530, 4294901760
    %833 = vmatpush1.msra.mxu0 %v832
    %834 = vmatprep.subr.mxu0 0.0
    %v835 = vand.u32 %v531, 4294901760
    %836 = vmatpush1.msra.mxu0 %v835
    %837 = vmatprep.subr.mxu0 0.0
    %v838 = vand.u32 %v532, 4294901760
    %839 = vmatpush1.msra.mxu0 %v838
    %840 = vmatprep.subr.mxu0 0.0
    %v841 = vand.u32 %v533, 4294901760
    %842 = vmatpush1.msra.mxu0 %v841
    %843 = vmatprep.subr.mxu0 0.0
    %v844 = vand.u32 %v534, 4294901760
    %845 = vmatpush1.msra.mxu0 %v844
    %846 = vmatprep.subr.mxu0 0.0
    %v847 = vand.u32 %v535, 4294901760
    %848 = vmatpush1.msra.mxu0 %v847
    %849 = vmatprep.subr.mxu0 0.0
    %v850 = vand.u32 %v536, 4294901760
    %851 = vmatpush1.msra.mxu0 %v850
    %852 = vmatprep.subr.mxu0 0.0
    %v853 = vand.u32 %v537, 4294901760
    %854 = vmatpush1.msra.mxu0 %v853
    %855 = vmatprep.subr.mxu0 0.0
    %856 = vmatpush1.msra.mxu0 0.0
    %857 = vmatprep.subr.mxu0 0.0
    %858 = vmatpush1.msra.mxu0 0.0
    %859 = vmatprep.subr.mxu0 0.0
    %860 = vmatpush1.msra.mxu0 0.0
    %861 = vmatprep.subr.mxu0 0.0
    %862 = vmatpush1.msra.mxu0 0.0
    %863 = vmatprep.subr.mxu0 0.0
    %864 = vmatpush1.msra.mxu0 0.0
    %865 = vmatprep.subr.mxu0 0.0
    %866 = vmatpush1.msra.mxu0 0.0
    %867 = vmatprep.subr.mxu0 0.0
    %868 = vmatpush1.msra.mxu0 0.0
    %869 = vmatprep.subr.mxu0 0.0
    %870 = vmatpush1.msra.mxu0 0.0
    %871 = vmatprep.subr.mxu0 0.0
    %872 = vmatpush1.msra.mxu0 0.0
    %873 = vmatprep.subr.mxu0 0.0
    %874 = vmatpush1.msra.mxu0 0.0
    %875 = vmatprep.subr.mxu0 0.0
    %876 = vmatpush1.msra.mxu0 0.0
    %877 = vmatprep.subr.mxu0 0.0
    %878 = vmatpush1.msra.mxu0 0.0
    %879 = vmatprep.subr.mxu0 0.0
    %880 = vmatpush1.msra.mxu0 0.0
    %881 = vmatprep.subr.mxu0 0.0
    %882 = vmatpush1.msra.mxu0 0.0
    %883 = vmatprep.subr.mxu0 0.0
    %884 = vmatpush1.msra.mxu0 0.0
    %885 = vmatprep.subr.mxu0 0.0
    %886 = vmatpush1.msra.mxu0 0.0
    %887 = vmatprep.subr.mxu0 0.0
    %888 = vmatpush1.msra.mxu0 0.0
    %889 = vmatprep.subr.mxu0 0.0
    %890 = vmatpush1.msra.mxu0 0.0
    %891 = vmatprep.subr.mxu0 0.0
    %892 = vmatpush1.msra.mxu0 0.0
    %893 = vmatprep.subr.mxu0 0.0
    %894 = vmatpush1.msra.mxu0 0.0
    %895 = vmatprep.subr.mxu0 0.0
    %896 = vmatpush1.msra.mxu0 0.0
    %897 = vmatprep.subr.mxu0 0.0
    %898 = vmatpush1.msra.mxu0 0.0
    %899 = vmatprep.subr.mxu0 0.0
    %900 = vmatpush1.msra.mxu0 0.0
    %901 = vmatprep.subr.mxu0 0.0
    %902 = vmatpush1.msra.mxu0 0.0
    %903 = vmatprep.mubr.f32.mxu0 0.0
    %v904 = vand.u32 %v547, 4294901760
    %v905 = vsub.f32 %v547, %v904
    %v906 = vand.u32 %v905, 4294901760
    %907 = vmatmul.mubr.f32.gmra.mrb[0].mxu0 %v906
    %v908 = vpop.f32.mrb[0].mxu0
    %v909 = vadd.f32 %v828, %v908
    %v910 = vpop.f32.mrb[0].mxu0
    %911 = vdwg.mxu0
    %912 = vmatprep.subr.mxu0 0.0
    %v913 = vand.u32 %v530, 4294901760
    %v914 = vsub.f32 %v530, %v913
    %v915 = vand.u32 %v914, 4294901760
    %916 = vmatpush1.msra.mxu0 %v915
    %917 = vmatprep.subr.mxu0 0.0
    %v918 = vand.u32 %v531, 4294901760
    %v919 = vsub.f32 %v531, %v918
    %v920 = vand.u32 %v919, 4294901760
    %921 = vmatpush1.msra.mxu0 %v920
    %922 = vmatprep.subr.mxu0 0.0
    %v923 = vand.u32 %v532, 4294901760
    %v924 = vsub.f32 %v532, %v923
    %v925 = vand.u32 %v924, 4294901760
    %926 = vmatpush1.msra.mxu0 %v925
    %927 = vmatprep.subr.mxu0 0.0
    %v928 = vand.u32 %v533, 4294901760
    %v929 = vsub.f32 %v533, %v928
    %v930 = vand.u32 %v929, 4294901760
    %931 = vmatpush1.msra.mxu0 %v930
    %932 = vmatprep.subr.mxu0 0.0
    %v933 = vand.u32 %v534, 4294901760
    %v934 = vsub.f32 %v534, %v933
    %v935 = vand.u32 %v934, 4294901760
    %936 = vmatpush1.msra.mxu0 %v935
    %937 = vmatprep.subr.mxu0 0.0
    %v938 = vand.u32 %v535, 4294901760
    %v939 = vsub.f32 %v535, %v938
    %v940 = vand.u32 %v939, 4294901760
    %941 = vmatpush1.msra.mxu0 %v940
    %942 = vmatprep.subr.mxu0 0.0
    %v943 = vand.u32 %v536, 4294901760
    %v944 = vsub.f32 %v536, %v943
    %v945 = vand.u32 %v944, 4294901760
    %946 = vmatpush1.msra.mxu0 %v945
    %947 = vmatprep.subr.mxu0 0.0
    %v948 = vand.u32 %v537, 4294901760
    %v949 = vsub.f32 %v537, %v948
    %v950 = vand.u32 %v949, 4294901760
    %951 = vmatpush1.msra.mxu0 %v950
    %952 = vmatprep.subr.mxu0 0.0
    %953 = vmatpush1.msra.mxu0 0.0
    %954 = vmatprep.subr.mxu0 0.0
    %955 = vmatpush1.msra.mxu0 0.0
    %956 = vmatprep.subr.mxu0 0.0
    %957 = vmatpush1.msra.mxu0 0.0
    %958 = vmatprep.subr.mxu0 0.0
    %959 = vmatpush1.msra.mxu0 0.0
    %960 = vmatprep.subr.mxu0 0.0
    %961 = vmatpush1.msra.mxu0 0.0
    %962 = vmatprep.subr.mxu0 0.0
    %963 = vmatpush1.msra.mxu0 0.0
    %964 = vmatprep.subr.mxu0 0.0
    %965 = vmatpush1.msra.mxu0 0.0
    %966 = vmatprep.subr.mxu0 0.0
    %967 = vmatpush1.msra.mxu0 0.0
    %968 = vmatprep.subr.mxu0 0.0
    %969 = vmatpush1.msra.mxu0 0.0
    %970 = vmatprep.subr.mxu0 0.0
    %971 = vmatpush1.msra.mxu0 0.0
    %972 = vmatprep.subr.mxu0 0.0
    %973 = vmatpush1.msra.mxu0 0.0
    %974 = vmatprep.subr.mxu0 0.0
    %975 = vmatpush1.msra.mxu0 0.0
    %976 = vmatprep.subr.mxu0 0.0
    %977 = vmatpush1.msra.mxu0 0.0
    %978 = vmatprep.subr.mxu0 0.0
    %979 = vmatpush1.msra.mxu0 0.0
    %980 = vmatprep.subr.mxu0 0.0
    %981 = vmatpush1.msra.mxu0 0.0
    %982 = vmatprep.subr.mxu0 0.0
    %983 = vmatpush1.msra.mxu0 0.0
    %984 = vmatprep.subr.mxu0 0.0
    %985 = vmatpush1.msra.mxu0 0.0
    %986 = vmatprep.subr.mxu0 0.0
    %987 = vmatpush1.msra.mxu0 0.0
    %988 = vmatprep.subr.mxu0 0.0
    %989 = vmatpush1.msra.mxu0 0.0
    %990 = vmatprep.subr.mxu0 0.0
    %991 = vmatpush1.msra.mxu0 0.0
    %992 = vmatprep.subr.mxu0 0.0
    %993 = vmatpush1.msra.mxu0 0.0
    %994 = vmatprep.subr.mxu0 0.0
    %995 = vmatpush1.msra.mxu0 0.0
    %996 = vmatprep.subr.mxu0 0.0
    %997 = vmatpush1.msra.mxu0 0.0
    %998 = vmatprep.subr.mxu0 0.0
    %999 = vmatpush1.msra.mxu0 0.0
    %1000 = vmatprep.mubr.f32.mxu0 0.0
    %v1001 = vand.u32 %v547, 4294901760
    %1002 = vmatmul.mubr.f32.gmra.mrb[0].mxu0 %v1001
    %v1003 = vpop.f32.mrb[0].mxu0
    %v1004 = vadd.f32 %v909, %v1003
    %v1005 = vpop.f32.mrb[0].mxu0
    %1006 = vdwg.mxu0
    %1007 = vmatprep.subr.mxu0 0.0
    %v1008 = vand.u32 %v530, 4294901760
    %1009 = vmatpush1.msra.mxu0 %v1008
    %1010 = vmatprep.subr.mxu0 0.0
    %v1011 = vand.u32 %v531, 4294901760
    %1012 = vmatpush1.msra.mxu0 %v1011
    %1013 = vmatprep.subr.mxu0 0.0
    %v1014 = vand.u32 %v532, 4294901760
    %1015 = vmatpush1.msra.mxu0 %v1014
    %1016 = vmatprep.subr.mxu0 0.0
    %v1017 = vand.u32 %v533, 4294901760
    %1018 = vmatpush1.msra.mxu0 %v1017
    %1019 = vmatprep.subr.mxu0 0.0
    %v1020 = vand.u32 %v534, 4294901760
    %1021 = vmatpush1.msra.mxu0 %v1020
    %1022 = vmatprep.subr.mxu0 0.0
    %v1023 = vand.u32 %v535, 4294901760
    %1024 = vmatpush1.msra.mxu0 %v1023
    %1025 = vmatprep.subr.mxu0 0.0
    %v1026 = vand.u32 %v536, 4294901760
    %1027 = vmatpush1.msra.mxu0 %v1026
    %1028 = vmatprep.subr.mxu0 0.0
    %v1029 = vand.u32 %v537, 4294901760
    %1030 = vmatpush1.msra.mxu0 %v1029
    %1031 = vmatprep.subr.mxu0 0.0
    %1032 = vmatpush1.msra.mxu0 0.0
    %1033 = vmatprep.subr.mxu0 0.0
    %1034 = vmatpush1.msra.mxu0 0.0
    %1035 = vmatprep.subr.mxu0 0.0
    %1036 = vmatpush1.msra.mxu0 0.0
    %1037 = vmatprep.subr.mxu0 0.0
    %1038 = vmatpush1.msra.mxu0 0.0
    %1039 = vmatprep.subr.mxu0 0.0
    %1040 = vmatpush1.msra.mxu0 0.0
    %1041 = vmatprep.subr.mxu0 0.0
    %1042 = vmatpush1.msra.mxu0 0.0
    %1043 = vmatprep.subr.mxu0 0.0
    %1044 = vmatpush1.msra.mxu0 0.0
    %1045 = vmatprep.subr.mxu0 0.0
    %1046 = vmatpush1.msra.mxu0 0.0
    %1047 = vmatprep.subr.mxu0 0.0
    %1048 = vmatpush1.msra.mxu0 0.0
    %1049 = vmatprep.subr.mxu0 0.0
    %1050 = vmatpush1.msra.mxu0 0.0
    %1051 = vmatprep.subr.mxu0 0.0
    %1052 = vmatpush1.msra.mxu0 0.0
    %1053 = vmatprep.subr.mxu0 0.0
    %1054 = vmatpush1.msra.mxu0 0.0
    %1055 = vmatprep.subr.mxu0 0.0
    %1056 = vmatpush1.msra.mxu0 0.0
    %1057 = vmatprep.subr.mxu0 0.0
    %1058 = vmatpush1.msra.mxu0 0.0
    %1059 = vmatprep.subr.mxu0 0.0
    %1060 = vmatpush1.msra.mxu0 0.0
    %1061 = vmatprep.subr.mxu0 0.0
    %1062 = vmatpush1.msra.mxu0 0.0
    %1063 = vmatprep.subr.mxu0 0.0
    %1064 = vmatpush1.msra.mxu0 0.0
    %1065 = vmatprep.subr.mxu0 0.0
    %1066 = vmatpush1.msra.mxu0 0.0
    %1067 = vmatprep.subr.mxu0 0.0
    %1068 = vmatpush1.msra.mxu0 0.0
    %1069 = vmatprep.subr.mxu0 0.0
    %1070 = vmatpush1.msra.mxu0 0.0
    %1071 = vmatprep.subr.mxu0 0.0
    %1072 = vmatpush1.msra.mxu0 0.0
    %1073 = vmatprep.subr.mxu0 0.0
    %1074 = vmatpush1.msra.mxu0 0.0
    %1075 = vmatprep.subr.mxu0 0.0
    %1076 = vmatpush1.msra.mxu0 0.0
    %1077 = vmatprep.subr.mxu0 0.0
    %1078 = vmatpush1.msra.mxu0 0.0
    %1079 = vmatprep.mubr.f32.mxu0 0.0
    %v1080 = vand.u32 %v547, 4294901760
    %1081 = vmatmul.mubr.f32.gmra.mrb[0].mxu0 %v1080
    %v1082 = vpop.f32.mrb[0].mxu0
    %v1083 = vadd.f32 %v1004, %v1082
    %v1084 = vpop.f32.mrb[0].mxu0
    %1085 = vdwg.mxu0
    %v1086 = vtanh.pop %v1083
    %v1087 = vld [vmem:[%s5] sm:$0x1]
    %s1088 = sld [smem:[#allocation2]]
    %v1089 = vstv %s1088
    %v1091 = vsel %vm40, %v1087, 0
    %v1094 = vsel %vm40, %v1086, 0
    %1096 = vmatprep.subr.mxu0 0.0
    %v1097 = vand.u32 %v1094, 4294901760
    %1098 = vmatpush1.xpose.msra.mxu0 %v1097
    %1099 = vmatprep.subr.mxu0 0.0
    %1100 = vmatpush1.xpose.msra.mxu0 0.0
    %1101 = vmatprep.subr.mxu0 0.0
    %1102 = vmatpush1.xpose.msra.mxu0 0.0
    %1103 = vmatprep.subr.mxu0 0.0
    %1104 = vmatpush1.xpose.msra.mxu0 0.0
    %1105 = vmatprep.subr.mxu0 0.0
    %1106 = vmatpush1.xpose.msra.mxu0 0.0
    %1107 = vmatprep.subr.mxu0 0.0
    %1108 = vmatpush1.xpose.msra.mxu0 0.0
    %1109 = vmatprep.subr.mxu0 0.0
    %1110 = vmatpush1.xpose.msra.mxu0 0.0
    %1111 = vmatprep.subr.mxu0 0.0
    %1112 = vmatpush1.xpose.msra.mxu0 0.0
    %1113 = vmatprep.subr.mxu0 0.0
    %1114 = vmatpush1.xpose.msra.mxu0 0.0
    %1115 = vmatprep.subr.mxu0 0.0
    %1116 = vmatpush1.xpose.msra.mxu0 0.0
    %1117 = vmatprep.subr.mxu0 0.0
    %1118 = vmatpush1.xpose.msra.mxu0 0.0
    %1119 = vmatprep.subr.mxu0 0.0
    %1120 = vmatpush1.xpose.msra.mxu0 0.0
    %1121 = vmatprep.subr.mxu0 0.0
    %1122 = vmatpush1.xpose.msra.mxu0 0.0
    %1123 = vmatprep.subr.mxu0 0.0
    %1124 = vmatpush1.xpose.msra.mxu0 0.0
    %1125 = vmatprep.subr.mxu0 0.0
    %1126 = vmatpush1.xpose.msra.mxu0 0.0
    %1127 = vmatprep.subr.mxu0 0.0
    %1128 = vmatpush1.xpose.msra.mxu0 0.0
    %1129 = vmatprep.subr.mxu0 0.0
    %1130 = vmatpush1.xpose.msra.mxu0 0.0
    %1131 = vmatprep.subr.mxu0 0.0
    %1132 = vmatpush1.xpose.msra.mxu0 0.0
    %1133 = vmatprep.subr.mxu0 0.0
    %1134 = vmatpush1.xpose.msra.mxu0 0.0
    %1135 = vmatprep.subr.mxu0 0.0
    %1136 = vmatpush1.xpose.msra.mxu0 0.0
    %1137 = vmatprep.subr.mxu0 0.0
    %1138 = vmatpush1.xpose.msra.mxu0 0.0
    %1139 = vmatprep.subr.mxu0 0.0
    %1140 = vmatpush1.xpose.msra.mxu0 0.0
    %1141 = vmatprep.subr.mxu0 0.0
    %1142 = vmatpush1.xpose.msra.mxu0 0.0
    %1143 = vmatprep.subr.mxu0 0.0
    %1144 = vmatpush1.xpose.msra.mxu0 0.0
    %1145 = vmatprep.subr.mxu0 0.0
    %1146 = vmatpush1.xpose.msra.mxu0 0.0
    %1147 = vmatprep.subr.mxu0 0.0
    %1148 = vmatpush1.xpose.msra.mxu0 0.0
    %1149 = vmatprep.subr.mxu0 0.0
    %1150 = vmatpush1.xpose.msra.mxu0 0.0
    %1151 = vmatprep.subr.mxu0 0.0
    %1152 = vmatpush1.xpose.msra.mxu0 0.0
    %1153 = vmatprep.subr.mxu0 0.0
    %1154 = vmatpush1.xpose.msra.mxu0 0.0
    %1155 = vmatprep.subr.mxu0 0.0
    %1156 = vmatpush1.xpose.msra.mxu0 0.0
    %1157 = vmatprep.subr.mxu0 0.0
    %1158 = vmatpush1.xpose.msra.mxu0 0.0
    %1159 = vmatprep.subr.mxu0 0.0
    %1160 = vmatpush1.xpose.msra.mxu0 0.0
    %1161 = vmatprep.mubr.f32.mxu0 0.0
    %v1162 = vand.u32 %v1091, 4294901760
    %v1163 = vsub.f32 %v1091, %v1162
    %v1164 = vand.u32 %v1163, 4294901760
    %v1165 = vsub.f32 %v1163, %v1164
    %v1166 = vand.u32 %v1165, 4294901760
    %1167 = vmatmul.mubr.f32.gmra.mrb[0].mxu0 %v1166
    %v1168 = vpop.f32.mrb[0].mxu0
    %v1169 = vadd.f32 %v1089, %v1168
    %v1170 = vpop.f32.mrb[0].mxu0
    %1171 = vdwg.mxu0
    %1172 = vmatprep.subr.mxu0 0.0
    %v1173 = vand.u32 %v1094, 4294901760
    %v1174 = vsub.f32 %v1094, %v1173
    %v1175 = vand.u32 %v1174, 4294901760
    %v1176 = vsub.f32 %v1174, %v1175
    %v1177 = vand.u32 %v1176, 4294901760
    %1178 = vmatpush1.xpose.msra.mxu0 %v1177
    %1179 = vmatprep.subr.mxu0 0.0
    %1180 = vmatpush1.xpose.msra.mxu0 0.0
    %1181 = vmatprep.subr.mxu0 0.0
    %1182 = vmatpush1.xpose.msra.mxu0 0.0
    %1183 = vmatprep.subr.mxu0 0.0
    %1184 = vmatpush1.xpose.msra.mxu0 0.0
    %1185 = vmatprep.subr.mxu0 0.0
    %1186 = vmatpush1.xpose.msra.mxu0 0.0
    %1187 = vmatprep.subr.mxu0 0.0
    %1188 = vmatpush1.xpose.msra.mxu0 0.0
    %1189 = vmatprep.subr.mxu0 0.0
    %1190 = vmatpush1.xpose.msra.mxu0 0.0
    %1191 = vmatprep.subr.mxu0 0.0
    %1192 = vmatpush1.xpose.msra.mxu0 0.0
    %1193 = vmatprep.subr.mxu0 0.0
    %1194 = vmatpush1.xpose.msra.mxu0 0.0
    %1195 = vmatprep.subr.mxu0 0.0
    %1196 = vmatpush1.xpose.msra.mxu0 0.0
    %1197 = vmatprep.subr.mxu0 0.0
    %1198 = vmatpush1.xpose.msra.mxu0 0.0
    %1199 = vmatprep.subr.mxu0 0.0
    %1200 = vmatpush1.xpose.msra.mxu0 0.0
    %1201 = vmatprep.subr.mxu0 0.0
    %1202 = vmatpush1.xpose.msra.mxu0 0.0
    %1203 = vmatprep.subr.mxu0 0.0
    %1204 = vmatpush1.xpose.msra.mxu0 0.0
    %1205 = vmatprep.subr.mxu0 0.0
    %1206 = vmatpush1.xpose.msra.mxu0 0.0
    %1207 = vmatprep.subr.mxu0 0.0
    %1208 = vmatpush1.xpose.msra.mxu0 0.0
    %1209 = vmatprep.subr.mxu0 0.0
    %1210 = vmatpush1.xpose.msra.mxu0 0.0
    %1211 = vmatprep.subr.mxu0 0.0
    %1212 = vmatpush1.xpose.msra.mxu0 0.0
    %1213 = vmatprep.subr.mxu0 0.0
    %1214 = vmatpush1.xpose.msra.mxu0 0.0
    %1215 = vmatprep.subr.mxu0 0.0
    %1216 = vmatpush1.xpose.msra.mxu0 0.0
    %1217 = vmatprep.subr.mxu0 0.0
    %1218 = vmatpush1.xpose.msra.mxu0 0.0
    %1219 = vmatprep.subr.mxu0 0.0
    %1220 = vmatpush1.xpose.msra.mxu0 0.0
    %1221 = vmatprep.subr.mxu0 0.0
    %1222 = vmatpush1.xpose.msra.mxu0 0.0
    %1223 = vmatprep.subr.mxu0 0.0
    %1224 = vmatpush1.xpose.msra.mxu0 0.0
    %1225 = vmatprep.subr.mxu0 0.0
    %1226 = vmatpush1.xpose.msra.mxu0 0.0
    %1227 = vmatprep.subr.mxu0 0.0
    %1228 = vmatpush1.xpose.msra.mxu0 0.0
    %1229 = vmatprep.subr.mxu0 0.0
    %1230 = vmatpush1.xpose.msra.mxu0 0.0
    %1231 = vmatprep.subr.mxu0 0.0
    %1232 = vmatpush1.xpose.msra.mxu0 0.0
    %1233 = vmatprep.subr.mxu0 0.0
    %1234 = vmatpush1.xpose.msra.mxu0 0.0
    %1235 = vmatprep.subr.mxu0 0.0
    %1236 = vmatpush1.xpose.msra.mxu0 0.0
    %1237 = vmatprep.subr.mxu0 0.0
    %1238 = vmatpush1.xpose.msra.mxu0 0.0
    %1239 = vmatprep.subr.mxu0 0.0
    %1240 = vmatpush1.xpose.msra.mxu0 0.0
    %1241 = vmatprep.mubr.f32.mxu0 0.0
    %v1242 = vand.u32 %v1091, 4294901760
    %1243 = vmatmul.mubr.f32.gmra.mrb[0].mxu0 %v1242
    %v1244 = vpop.f32.mrb[0].mxu0
    %v1245 = vadd.f32 %v1169, %v1244
    %v1246 = vpop.f32.mrb[0].mxu0
    %1247 = vdwg.mxu0
    %1248 = vmatprep.subr.mxu0 0.0
    %v1249 = vand.u32 %v1094, 4294901760
    %v1250 = vsub.f32 %v1094, %v1249
    %1251 = vmatpush1.xpose.msra.mxu0 %v1250
    %1252 = vmatprep.subr.mxu0 0.0
    %1253 = vmatpush1.xpose.msra.mxu0 0.0
    %1254 = vmatprep.subr.mxu0 0.0
    %1255 = vmatpush1.xpose.msra.mxu0 0.0
    %1256 = vmatprep.subr.mxu0 0.0
    %1257 = vmatpush1.xpose.msra.mxu0 0.0
    %1258 = vmatprep.subr.mxu0 0.0
    %1259 = vmatpush1.xpose.msra.mxu0 0.0
    %1260 = vmatprep.subr.mxu0 0.0
    %1261 = vmatpush1.xpose.msra.mxu0 0.0
    %1262 = vmatprep.subr.mxu0 0.0
    %1263 = vmatpush1.xpose.msra.mxu0 0.0
    %1264 = vmatprep.subr.mxu0 0.0
    %1265 = vmatpush1.xpose.msra.mxu0 0.0
    %1266 = vmatprep.subr.mxu0 0.0
    %1267 = vmatpush1.xpose.msra.mxu0 0.0
    %1268 = vmatprep.subr.mxu0 0.0
    %1269 = vmatpush1.xpose.msra.mxu0 0.0
    %1270 = vmatprep.subr.mxu0 0.0
    %1271 = vmatpush1.xpose.msra.mxu0 0.0
    %1272 = vmatprep.subr.mxu0 0.0
    %1273 = vmatpush1.xpose.msra.mxu0 0.0
    %1274 = vmatprep.subr.mxu0 0.0
    %1275 = vmatpush1.xpose.msra.mxu0 0.0
    %1276 = vmatprep.subr.mxu0 0.0
    %1277 = vmatpush1.xpose.msra.mxu0 0.0
    %1278 = vmatprep.subr.mxu0 0.0
    %1279 = vmatpush1.xpose.msra.mxu0 0.0
    %1280 = vmatprep.subr.mxu0 0.0
    %1281 = vmatpush1.xpose.msra.mxu0 0.0
    %1282 = vmatprep.subr.mxu0 0.0
    %1283 = vmatpush1.xpose.msra.mxu0 0.0
    %1284 = vmatprep.subr.mxu0 0.0
    %1285 = vmatpush1.xpose.msra.mxu0 0.0
    %1286 = vmatprep.subr.mxu0 0.0
    %1287 = vmatpush1.xpose.msra.mxu0 0.0
    %1288 = vmatprep.subr.mxu0 0.0
    %1289 = vmatpush1.xpose.msra.mxu0 0.0
    %1290 = vmatprep.subr.mxu0 0.0
    %1291 = vmatpush1.xpose.msra.mxu0 0.0
    %1292 = vmatprep.subr.mxu0 0.0
    %1293 = vmatpush1.xpose.msra.mxu0 0.0
    %1294 = vmatprep.subr.mxu0 0.0
    %1295 = vmatpush1.xpose.msra.mxu0 0.0
    %1296 = vmatprep.subr.mxu0 0.0
    %1297 = vmatpush1.xpose.msra.mxu0 0.0
    %1298 = vmatprep.subr.mxu0 0.0
    %1299 = vmatpush1.xpose.msra.mxu0 0.0
    %1300 = vmatprep.subr.mxu0 0.0
    %1301 = vmatpush1.xpose.msra.mxu0 0.0
    %1302 = vmatprep.subr.mxu0 0.0
    %1303 = vmatpush1.xpose.msra.mxu0 0.0
    %1304 = vmatprep.subr.mxu0 0.0
    %1305 = vmatpush1.xpose.msra.mxu0 0.0
    %1306 = vmatprep.subr.mxu0 0.0
    %1307 = vmatpush1.xpose.msra.mxu0 0.0
    %1308 = vmatprep.subr.mxu0 0.0
    %1309 = vmatpush1.xpose.msra.mxu0 0.0
    %1310 = vmatprep.subr.mxu0 0.0
    %1311 = vmatpush1.xpose.msra.mxu0 0.0
    %1312 = vmatprep.subr.mxu0 0.0
    %1313 = vmatpush1.xpose.msra.mxu0 0.0
    %1314 = vmatprep.mubr.f32.mxu0 0.0
    %v1315 = vand.u32 %v1091, 4294901760
    %v1316 = vsub.f32 %v1091, %v1315
    %1317 = vmatmul.mubr.f32.gmra.mrb[0].mxu0 %v1316
    %v1318 = vpop.f32.mrb[0].mxu0
    %v1319 = vadd.f32 %v1245, %v1318
    %v1320 = vpop.f32.mrb[0].mxu0
    %1321 = vdwg.mxu0
    %1322 = vmatprep.subr.mxu0 0.0
    %v1323 = vand.u32 %v1094, 4294901760
    %1324 = vmatpush1.xpose.msra.mxu0 %v1323
    %1325 = vmatprep.subr.mxu0 0.0
    %1326 = vmatpush1.xpose.msra.mxu0 0.0
    %1327 = vmatprep.subr.mxu0 0.0
    %1328 = vmatpush1.xpose.msra.mxu0 0.0
    %1329 = vmatprep.subr.mxu0 0.0
    %1330 = vmatpush1.xpose.msra.mxu0 0.0
    %1331 = vmatprep.subr.mxu0 0.0
    %1332 = vmatpush1.xpose.msra.mxu0 0.0
    %1333 = vmatprep.subr.mxu0 0.0
    %1334 = vmatpush1.xpose.msra.mxu0 0.0
    %1335 = vmatprep.subr.mxu0 0.0
    %1336 = vmatpush1.xpose.msra.mxu0 0.0
    %1337 = vmatprep.subr.mxu0 0.0
    %1338 = vmatpush1.xpose.msra.mxu0 0.0
    %1339 = vmatprep.subr.mxu0 0.0
    %1340 = vmatpush1.xpose.msra.mxu0 0.0
    %1341 = vmatprep.subr.mxu0 0.0
    %1342 = vmatpush1.xpose.msra.mxu0 0.0
    %1343 = vmatprep.subr.mxu0 0.0
    %1344 = vmatpush1.xpose.msra.mxu0 0.0
    %1345 = vmatprep.subr.mxu0 0.0
    %1346 = vmatpush1.xpose.msra.mxu0 0.0
    %1347 = vmatprep.subr.mxu0 0.0
    %1348 = vmatpush1.xpose.msra.mxu0 0.0
    %1349 = vmatprep.subr.mxu0 0.0
    %1350 = vmatpush1.xpose.msra.mxu0 0.0
    %1351 = vmatprep.subr.mxu0 0.0
    %1352 = vmatpush1.xpose.msra.mxu0 0.0
    %1353 = vmatprep.subr.mxu0 0.0
    %1354 = vmatpush1.xpose.msra.mxu0 0.0
    %1355 = vmatprep.subr.mxu0 0.0
    %1356 = vmatpush1.xpose.msra.mxu0 0.0
    %1357 = vmatprep.subr.mxu0 0.0
    %1358 = vmatpush1.xpose.msra.mxu0 0.0
    %1359 = vmatprep.subr.mxu0 0.0
    %1360 = vmatpush1.xpose.msra.mxu0 0.0
    %1361 = vmatprep.subr.mxu0 0.0
    %1362 = vmatpush1.xpose.msra.mxu0 0.0
    %1363 = vmatprep.subr.mxu0 0.0
    %1364 = vmatpush1.xpose.msra.mxu0 0.0
    %1365 = vmatprep.subr.mxu0 0.0
    %1366 = vmatpush1.xpose.msra.mxu0 0.0
    %1367 = vmatprep.subr.mxu0 0.0
    %1368 = vmatpush1.xpose.msra.mxu0 0.0
    %1369 = vmatprep.subr.mxu0 0.0
    %1370 = vmatpush1.xpose.msra.mxu0 0.0
    %1371 = vmatprep.subr.mxu0 0.0
    %1372 = vmatpush1.xpose.msra.mxu0 0.0
    %1373 = vmatprep.subr.mxu0 0.0
    %1374 = vmatpush1.xpose.msra.mxu0 0.0
    %1375 = vmatprep.subr.mxu0 0.0
    %1376 = vmatpush1.xpose.msra.mxu0 0.0
    %1377 = vmatprep.subr.mxu0 0.0
    %1378 = vmatpush1.xpose.msra.mxu0 0.0
    %1379 = vmatprep.subr.mxu0 0.0
    %1380 = vmatpush1.xpose.msra.mxu0 0.0
    %1381 = vmatprep.subr.mxu0 0.0
    %1382 = vmatpush1.xpose.msra.mxu0 0.0
    %1383 = vmatprep.subr.mxu0 0.0
    %1384 = vmatpush1.xpose.msra.mxu0 0.0
    %1385 = vmatprep.subr.mxu0 0.0
    %1386 = vmatpush1.xpose.msra.mxu0 0.0
    %1387 = vmatprep.mubr.f32.mxu0 0.0
    %v1388 = vand.u32 %v1091, 4294901760
    %v1389 = vsub.f32 %v1091, %v1388
    %v1390 = vand.u32 %v1389, 4294901760
    %1391 = vmatmul.mubr.f32.gmra.mrb[0].mxu0 %v1390
    %v1392 = vpop.f32.mrb[0].mxu0
    %v1393 = vadd.f32 %v1319, %v1392
    %v1394 = vpop.f32.mrb[0].mxu0
    %1395 = vdwg.mxu0
    %1396 = vmatprep.subr.mxu0 0.0
    %v1397 = vand.u32 %v1094, 4294901760
    %v1398 = vsub.f32 %v1094, %v1397
    %v1399 = vand.u32 %v1398, 4294901760
    %1400 = vmatpush1.xpose.msra.mxu0 %v1399
    %1401 = vmatprep.subr.mxu0 0.0
    %1402 = vmatpush1.xpose.msra.mxu0 0.0
    %1403 = vmatprep.subr.mxu0 0.0
    %1404 = vmatpush1.xpose.msra.mxu0 0.0
    %1405 = vmatprep.subr.mxu0 0.0
    %1406 = vmatpush1.xpose.msra.mxu0 0.0
    %1407 = vmatprep.subr.mxu0 0.0
    %1408 = vmatpush1.xpose.msra.mxu0 0.0
    %1409 = vmatprep.subr.mxu0 0.0
    %1410 = vmatpush1.xpose.msra.mxu0 0.0
    %1411 = vmatprep.subr.mxu0 0.0
    %1412 = vmatpush1.xpose.msra.mxu0 0.0
    %1413 = vmatprep.subr.mxu0 0.0
    %1414 = vmatpush1.xpose.msra.mxu0 0.0
    %1415 = vmatprep.subr.mxu0 0.0
    %1416 = vmatpush1.xpose.msra.mxu0 0.0
    %1417 = vmatprep.subr.mxu0 0.0
    %1418 = vmatpush1.xpose.msra.mxu0 0.0
    %1419 = vmatprep.subr.mxu0 0.0
    %1420 = vmatpush1.xpose.msra.mxu0 0.0
    %1421 = vmatprep.subr.mxu0 0.0
    %1422 = vmatpush1.xpose.msra.mxu0 0.0
    %1423 = vmatprep.subr.mxu0 0.0
    %1424 = vmatpush1.xpose.msra.mxu0 0.0
    %1425 = vmatprep.subr.mxu0 0.0
    %1426 = vmatpush1.xpose.msra.mxu0 0.0
    %1427 = vmatprep.subr.mxu0 0.0
    %1428 = vmatpush1.xpose.msra.mxu0 0.0
    %1429 = vmatprep.subr.mxu0 0.0
    %1430 = vmatpush1.xpose.msra.mxu0 0.0
    %1431 = vmatprep.subr.mxu0 0.0
    %1432 = vmatpush1.xpose.msra.mxu0 0.0
    %1433 = vmatprep.subr.mxu0 0.0
    %1434 = vmatpush1.xpose.msra.mxu0 0.0
    %1435 = vmatprep.subr.mxu0 0.0
    %1436 = vmatpush1.xpose.msra.mxu0 0.0
    %1437 = vmatprep.subr.mxu0 0.0
    %1438 = vmatpush1.xpose.msra.mxu0 0.0
    %1439 = vmatprep.subr.mxu0 0.0
    %1440 = vmatpush1.xpose.msra.mxu0 0.0
    %1441 = vmatprep.subr.mxu0 0.0
    %1442 = vmatpush1.xpose.msra.mxu0 0.0
    %1443 = vmatprep.subr.mxu0 0.0
    %1444 = vmatpush1.xpose.msra.mxu0 0.0
    %1445 = vmatprep.subr.mxu0 0.0
    %1446 = vmatpush1.xpose.msra.mxu0 0.0
    %1447 = vmatprep.subr.mxu0 0.0
    %1448 = vmatpush1.xpose.msra.mxu0 0.0
    %1449 = vmatprep.subr.mxu0 0.0
    %1450 = vmatpush1.xpose.msra.mxu0 0.0
    %1451 = vmatprep.subr.mxu0 0.0
    %1452 = vmatpush1.xpose.msra.mxu0 0.0
    %1453 = vmatprep.subr.mxu0 0.0
    %1454 = vmatpush1.xpose.msra.mxu0 0.0
    %1455 = vmatprep.subr.mxu0 0.0
    %1456 = vmatpush1.xpose.msra.mxu0 0.0
    %1457 = vmatprep.subr.mxu0 0.0
    %1458 = vmatpush1.xpose.msra.mxu0 0.0
    %1459 = vmatprep.subr.mxu0 0.0
    %1460 = vmatpush1.xpose.msra.mxu0 0.0
    %1461 = vmatprep.subr.mxu0 0.0
    %1462 = vmatpush1.xpose.msra.mxu0 0.0
    %1463 = vmatprep.mubr.f32.mxu0 0.0
    %v1464 = vand.u32 %v1091, 4294901760
    %1465 = vmatmul.mubr.f32.gmra.mrb[0].mxu0 %v1464
    %v1466 = vpop.f32.mrb[0].mxu0
    %v1467 = vadd.f32 %v1393, %v1466
    %v1468 = vpop.f32.mrb[0].mxu0
    %1469 = vdwg.mxu0
    %1470 = vmatprep.subr.mxu0 0.0
    %v1471 = vand.u32 %v1094, 4294901760
    %1472 = vmatpush1.xpose.msra.mxu0 %v1471
    %1473 = vmatprep.subr.mxu0 0.0
    %1474 = vmatpush1.xpose.msra.mxu0 0.0
    %1475 = vmatprep.subr.mxu0 0.0
    %1476 = vmatpush1.xpose.msra.mxu0 0.0
    %1477 = vmatprep.subr.mxu0 0.0
    %1478 = vmatpush1.xpose.msra.mxu0 0.0
    %1479 = vmatprep.subr.mxu0 0.0
    %1480 = vmatpush1.xpose.msra.mxu0 0.0
    %1481 = vmatprep.subr.mxu0 0.0
    %1482 = vmatpush1.xpose.msra.mxu0 0.0
    %1483 = vmatprep.subr.mxu0 0.0
    %1484 = vmatpush1.xpose.msra.mxu0 0.0
    %1485 = vmatprep.subr.mxu0 0.0
    %1486 = vmatpush1.xpose.msra.mxu0 0.0
    %1487 = vmatprep.subr.mxu0 0.0
    %1488 = vmatpush1.xpose.msra.mxu0 0.0
    %1489 = vmatprep.subr.mxu0 0.0
    %1490 = vmatpush1.xpose.msra.mxu0 0.0
    %1491 = vmatprep.subr.mxu0 0.0
    %1492 = vmatpush1.xpose.msra.mxu0 0.0
    %1493 = vmatprep.subr.mxu0 0.0
    %1494 = vmatpush1.xpose.msra.mxu0 0.0
    %1495 = vmatprep.subr.mxu0 0.0
    %1496 = vmatpush1.xpose.msra.mxu0 0.0
    %1497 = vmatprep.subr.mxu0 0.0
    %1498 = vmatpush1.xpose.msra.mxu0 0.0
    %1499 = vmatprep.subr.mxu0 0.0
    %1500 = vmatpush1.xpose.msra.mxu0 0.0
    %1501 = vmatprep.subr.mxu0 0.0
    %1502 = vmatpush1.xpose.msra.mxu0 0.0
    %1503 = vmatprep.subr.mxu0 0.0
    %1504 = vmatpush1.xpose.msra.mxu0 0.0
    %1505 = vmatprep.subr.mxu0 0.0
    %1506 = vmatpush1.xpose.msra.mxu0 0.0
    %1507 = vmatprep.subr.mxu0 0.0
    %1508 = vmatpush1.xpose.msra.mxu0 0.0
    %1509 = vmatprep.subr.mxu0 0.0
    %1510 = vmatpush1.xpose.msra.mxu0 0.0
    %1511 = vmatprep.subr.mxu0 0.0
    %1512 = vmatpush1.xpose.msra.mxu0 0.0
    %1513 = vmatprep.subr.mxu0 0.0
    %1514 = vmatpush1.xpose.msra.mxu0 0.0
    %1515 = vmatprep.subr.mxu0 0.0
    %1516 = vmatpush1.xpose.msra.mxu0 0.0
    %1517 = vmatprep.subr.mxu0 0.0
    %1518 = vmatpush1.xpose.msra.mxu0 0.0
    %1519 = vmatprep.subr.mxu0 0.0
    %1520 = vmatpush1.xpose.msra.mxu0 0.0
    %1521 = vmatprep.subr.mxu0 0.0
    %1522 = vmatpush1.xpose.msra.mxu0 0.0
    %1523 = vmatprep.subr.mxu0 0.0
    %1524 = vmatpush1.xpose.msra.mxu0 0.0
    %1525 = vmatprep.subr.mxu0 0.0
    %1526 = vmatpush1.xpose.msra.mxu0 0.0
    %1527 = vmatprep.subr.mxu0 0.0
    %1528 = vmatpush1.xpose.msra.mxu0 0.0
    %1529 = vmatprep.subr.mxu0 0.0
    %1530 = vmatpush1.xpose.msra.mxu0 0.0
    %1531 = vmatprep.subr.mxu0 0.0
    %1532 = vmatpush1.xpose.msra.mxu0 0.0
    %1533 = vmatprep.subr.mxu0 0.0
    %1534 = vmatpush1.xpose.msra.mxu0 0.0
    %1535 = vmatprep.mubr.f32.mxu0 0.0
    %v1536 = vand.u32 %v1091, 4294901760
    %1537 = vmatmul.mubr.f32.gmra.mrb[0].mxu0 %v1536
    %v1538 = vpop.f32.mrb[0].mxu0
    %v1539 = vadd.f32 %v1467, %v1538
    %v1540 = vpop.f32.mrb[0].mxu0
    %1541 = vdwg.mxu0
    %vm1542 = vcmask 57344
    %1543 = vst.msk [vmem:[#allocation3] sm:$0x1] %vm1542, %v1539
    // Predicated region
    $region30: #{tpu_custom_call.1} parent=1 // pred_check
      _
    $region31: #{tpu_custom_call.1} parent=1 // pred_check_branch
      %1545 = sbr.rel (0) target = $region33
    $region32: #{tpu_custom_call.1} parent=1 // pred_region
      %s1547 = ssub.s32 16, 16
      %1548 = vsyncadd [#allocation4], %s1547
      %s1550 = sshll.u32 [#allocation3], 4
      %s1551 = int_to_ptr.vmem [resolvable:$true] %s1550
      %1553 = dma.vmem_to_hbm [thread:$0]  %s1551, 16, %s7, [#allocation4]
    $region33: #{tpu_custom_call.1} parent=1 // pred_fallthru
      _
    // Predicated region
    $region34: #{tpu_custom_call.1} parent=1 // pred_check
      _
    $region35: #{tpu_custom_call.1} parent=1 // pred_check_branch
      %1555 = sbr.rel (0) target = $region37
    $region36: #{tpu_custom_call.1} parent=1 // pred_region
      %1556 = dma.done [#allocation4], 16
    $region37: #{tpu_custom_call.1} parent=1 // pred_fallthru
      _
    %1557 = vsyncpa [#allocation4], 1

</llo_original>
